<compile_context>
chip_gen: v7x
topology: tpu7x:2x2x1
jax: 0.10.0
libtpu: 0.0.40
codegen_flags: <defaults>
</compile_context>

<pallas_src>
import functools

import jax
import jax.numpy as jnp
from jax.experimental import pallas as pl
from jax.experimental.pallas import tpu as pltpu

LEAKY_SLOPE = 0.01   # torch.nn.LeakyReLU default negative_slope
ROW_ALIGN = 16       # bf16 sublane tile rows -> row offsets stay tile-aligned
LANE = 128           # lane tile width


def _rup(n, m):
    return ((n + m - 1) // m) * m


# ----------------------------------------------------------------------------
# Fused kernel: whole VAE forward for one batch tile.
# ----------------------------------------------------------------------------
def _vae_fused_kernel(x_ref, eps_ref, w_ref, b_ref, out_ref, *,
                      metas, n_enc, n_dec, in_ch, latent):
    bt = x_ref.shape[0]

    def fit_width(h, rows):
        """Match h's width to this layer's stored (zero-padded) fan-in."""
        cur = h.shape[1]
        if cur == rows:
            return h
        if cur > rows:
            return h[:, :rows]            # cols beyond real fan-in are zeros
        return jnp.concatenate(
            [h, jnp.zeros((bt, rows - cur), h.dtype)], axis=1)

    def layer(h, li, act):
        row_off, rows, out_pad = metas[li]
        # Static, tile-aligned slices of the resident slabs (no materialization).
        w = w_ref[row_off:row_off + rows, 0:out_pad]      # bf16 (rows, out_pad)
        b = b_ref[li:li + 1, 0:out_pad]                   # f32  (1, out_pad)
        h = fit_width(h, rows)
        y = jnp.dot(h.astype(w.dtype), w,
                    preferred_element_type=jnp.float32) + b
        if act:
            y = jnp.maximum(y, LEAKY_SLOPE * y)           # LeakyReLU (slope < 1)
        return y

    li = 0

    # ---------------- encode ----------------
    h = x_ref[...].astype(jnp.float32)
    for _ in range(n_enc):
        h = layer(h, li, act=True)
        li += 1

    # fused fc_mu | fc_var: one (hidden, 2*latent) matmul, split in-register
    mv = layer(h, li, act=False)
    li += 1
    mu = mv[:, :latent]
    log_var = mv[:, latent:2 * latent]

    # ------------- reparameterize (f32 throughout) -------------
    z = eps_ref[...] * jnp.exp(0.5 * log_var) + mu

    # ---------------- decode ----------------
    h = layer(z, li, act=False)           # decoder_input
    li += 1
    for _ in range(n_dec):
        h = layer(h, li, act=True)
        li += 1
    rec = layer(h, li, act=False)         # final_layer
    # TODO(synk): eval-mode renormalization (norm_std*result + norm_mean) skipped;
    #             module is in training mode so forward does not apply it.

    # ---- single lane-dense output store: [recons | mu | log_var | 0-pad] ----
    out_w = out_ref.shape[1]
    used = in_ch + 2 * latent
    pieces = [rec[:, :in_ch], mu, log_var]
    if out_w > used:
        pieces.append(jnp.zeros((bt, out_w - used), jnp.float32))
    out_ref[...] = jnp.concatenate(pieces, axis=1)


# ----------------------------------------------------------------------------
# One-time parameter packing (outside jit)
# ----------------------------------------------------------------------------
def pack_vae_params(params):
    """Pack all weights into one bf16 slab (concatenated along sublanes, each
    layer padded to (16,128)-aligned tiles) and all biases into one f32 stack."""
    layers = (list(params["encoder"])
              + [params["fc_muvar"], params["decoder_input"]]
              + list(params["decoder"])
              + [params["final_layer"]])
    dims = [(int(w.shape[0]), int(w.shape[1])) for w, _ in layers]
    slab_w = max(_rup(o, LANE) for _, o in dims)

    metas, w_blocks, b_rows = [], [], []
    row = 0
    for (w, b), (fin, fout) in zip(layers, dims):
        rows = _rup(fin, ROW_ALIGN)
        out_pad = _rup(fout, LANE)
        wb = jnp.zeros((rows, slab_w), jnp.bfloat16)
        # NOTE: bf16 weights deviate ~1e-2 rel. from an f32 torch reference;
        # switch this cast to float32 if bit-closeness matters.
        wb = wb.at[:fin, :fout].set(w.astype(jnp.bfloat16))
        w_blocks.append(wb)
        br = jnp.zeros((1, slab_w), jnp.float32)
        br = br.at[0, :fout].set(b.reshape(-1).astype(jnp.float32))
        b_rows.append(br)
        metas.append((row, rows, out_pad))
        row += rows

    w_slab = jnp.concatenate(w_blocks, axis=0)                 # (2016, 512) bf16
    n_rows = _rup(len(layers), 8)
    if n_rows > len(layers):
        b_rows.append(jnp.zeros((n_rows - len(layers), slab_w), jnp.float32))
    b_stack = jnp.concatenate(b_rows, axis=0)                  # (16, 512) f32

    meta = dict(metas=tuple(metas),
                n_enc=len(params["encoder"]),
                n_dec=len(params["decoder"]))
    return w_slab, b_stack, meta


# ----------------------------------------------------------------------------
# Wrapper: one pallas_call for the whole forward pass
# ----------------------------------------------------------------------------
def _choose_bt(batch):
    if batch <= 256:
        return batch                        # single latency-bound step
    if batch <= 2048:
        return _rup((batch + 1) // 2, 8)    # exactly 2 "parallel" steps -> both v7x TCs busy
    return 1024                             # amortize ~0.35us/step; ~2 MB f32 intermediates


def vae_forward(w_slab, b_stack, x, eps, *, metas, n_enc, n_dec):
    B, in_ch = x.shape
    latent = eps.shape[1]
    out_w = max(LANE, _rup(in_ch + 2 * latent, LANE))

    bt = _choose_bt(B)
    grid = -(-B // bt)
    B_pad = grid * bt
    if B_pad != B:                          # ragged batch: zero-pad, slice back
        x_k = jnp.pad(x, ((0, B_pad - B), (0, 0)))
        eps_k = jnp.pad(eps, ((0, B_pad - B), (0, 0)))
    else:
        x_k, eps_k = x, eps

    cost = pl.CostEstimate(
        flops=2 * B_pad * sum(r * o for _, r, o in metas),
        transcendentals=B_pad * latent,
        bytes_accessed=int(w_slab.size * 2 + b_stack.size * 4
                           + (x_k.size + eps_k.size + B_pad * out_w) * 4),
    )

    kernel = functools.partial(_vae_fused_kernel, metas=metas, n_enc=n_enc,
                               n_dec=n_dec, in_ch=in_ch, latent=latent)
    resident = lambda i: (0, 0)             # constant index_map: stays in VMEM

    out = pl.pallas_call(
        kernel,
        out_shape=jax.ShapeDtypeStruct((B_pad, out_w), jnp.float32),
        grid_spec=pltpu.PrefetchScalarGridSpec(
            num_scalar_prefetch=0,
            grid=(grid,),
            in_specs=[
                pl.BlockSpec((bt, in_ch), lambda i: (i, 0)),    # x tile
                pl.BlockSpec((bt, latent), lambda i: (i, 0)),   # eps tile
                pl.BlockSpec(w_slab.shape, resident),           # packed weights
                pl.BlockSpec(b_stack.shape, resident),          # packed biases
            ],
            out_specs=pl.BlockSpec((bt, out_w), lambda i: (i, 0)),
        ),
        compiler_params=pltpu.CompilerParams(
            dimension_semantics=("parallel",),   # batch axis shards across TCs
            vmem_limit_bytes=32 * 1024 * 1024,   # safe headroom on v5e/v6e/v7x
        ),
        cost_estimate=cost,
    )(x_k, eps_k, w_slab, b_stack)

    recons = out[:B, :in_ch]
    mu = out[:B, in_ch:in_ch + latent]
    log_var = out[:B, in_ch + latent:in_ch + 2 * latent]
    return [recons, x, mu, log_var]


# ----------------------------------------------------------------------------
# Parameter construction (PyTorch-Linear-style uniform init)
# ----------------------------------------------------------------------------
def _init_linear(key, fan_in, fan_out):
    kw, kb = jax.random.split(key)
    bound = float(fan_in) ** -0.5
    w = jax.random.uniform(kw, (fan_in, fan_out), jnp.float32, -bound, bound)
    b = jax.random.uniform(kb, (fan_out,), jnp.float32, -bound, bound)
    return w, b


def init_vae_params(key, in_channels, latent_dim, hidden_dims):
    params = {}
    keys = jax.random.split(key, 2 * len(hidden_dims) + 4)
    k = iter(keys)

    # encoder: in_channels -> 32 -> 64 -> 128 -> 256 -> 512 (Linear + LeakyReLU)
    enc = []
    d = in_channels
    for h in hidden_dims:
        enc.append(_init_linear(next(k), d, h))
        d = h
    params["encoder"] = enc

    # fc_mu and fc_var fused into a single (hidden, 2*latent) linear
    w_mu, b_mu = _init_linear(next(k), hidden_dims[-1], latent_dim)
    w_var, b_var = _init_linear(next(k), hidden_dims[-1], latent_dim)
    params["fc_muvar"] = (jnp.concatenate([w_mu, w_var], axis=1),
                          jnp.concatenate([b_mu, b_var], axis=0))

    # decoder: latent -> 512 -> 256 -> 128 -> 64 -> 32 -> in_channels
    rev = list(reversed(hidden_dims))
    params["decoder_input"] = _init_linear(next(k), latent_dim, rev[0])
    dec = []
    for i in range(len(rev) - 1):
        dec.append(_init_linear(next(k), rev[i], rev[i + 1]))
    params["decoder"] = dec
    params["final_layer"] = _init_linear(next(k), rev[-1], in_channels)
    return params


# ----------------------------------------------------------------------------
# Main
# ----------------------------------------------------------------------------
if __name__ == "__main__":
    in_channels = 4
    latent_dim = 8
    hidden_dims = [32, 64, 128, 256, 512]  # module default
    batch = 8

    root = jax.random.PRNGKey(0)
    k_params, k_x, k_eps = jax.random.split(root, 3)

    params = init_vae_params(k_params, in_channels, latent_dim, hidden_dims)
    w_slab, b_stack, meta = pack_vae_params(params)   # packed ONCE, outside jit

    x = jax.random.normal(k_x, (batch, in_channels), jnp.float32)
    # eps ~ N(0,1) host-side (distribution parity with torch.randn_like);
    # could move on-chip with pltpu.prng_seed/prng_random_bits if parity not needed.
    eps = jax.random.normal(k_eps, (batch, latent_dim), jnp.float32)

    fwd = jax.jit(functools.partial(vae_forward, metas=meta["metas"],
                                    n_enc=meta["n_enc"], n_dec=meta["n_dec"]))
    recons, x_out, mu, log_var = jax.block_until_ready(fwd(w_slab, b_stack, x, eps))

    assert recons.shape == (batch, in_channels)
    assert x_out.shape == (batch, in_channels)
    assert mu.shape == (batch, latent_dim)
    assert log_var.shape == (batch, latent_dim)
    assert bool(jnp.all(jnp.isfinite(recons)))
    assert bool(jnp.all(jnp.isfinite(mu)))
    assert bool(jnp.all(jnp.isfinite(log_var)))

    print("KERNEL_OK")
</pallas_src>

<mosaic_0001>
module attributes {stable_mosaic.version = 11 : i64} {
  func.func @_vae_fused_kernel(%arg0: i32, %arg1: memref<8x4xf32, #tpu.memory_space<vmem>>, %arg2: memref<8x8xf32, #tpu.memory_space<vmem>>, %arg3: memref<2016x512xbf16, #tpu.memory_space<vmem>>, %arg4: memref<16x512xf32, #tpu.memory_space<vmem>>, %arg5: memref<8x128xf32, #tpu.memory_space<vmem>>) attributes {dimension_semantics = [#tpu.dimension_semantics<parallel>], iteration_bounds = array<i64: 1>, scalar_prefetch = 0 : i64, scratch_operands = 0 : i64, tpu.core_type = #tpu.core_type<tc>, window_params = [{transform_indices = @transform_0, window_bounds = array<i64: 8, 4>}, {transform_indices = @transform_1, window_bounds = array<i64: 8, 8>}, {pipeline_mode = #tpu.pipeline_mode<synchronous>, transform_indices = @transform_2, window_bounds = array<i64: 2016, 512>}, {pipeline_mode = #tpu.pipeline_mode<synchronous>, transform_indices = @transform_3, window_bounds = array<i64: 16, 512>}, {transform_indices = @transform_4, window_bounds = array<i64: 8, 128>}]} {
    %c0 = arith.constant 0 : index
    %c0_0 = arith.constant 0 : index
    %0 = vector.load %arg1[%c0, %c0_0] : memref<8x4xf32, #tpu.memory_space<vmem>>, vector<8x4xf32>
    %c0_1 = arith.constant 0 : index
    %c0_2 = arith.constant 0 : index
    %1 = vector.load %arg3[%c0_1, %c0_2] : memref<2016x512xbf16, #tpu.memory_space<vmem>>, vector<16x128xbf16>
    %c0_3 = arith.constant 0 : index
    %c0_4 = arith.constant 0 : index
    %2 = vector.load %arg4[%c0_3, %c0_4] : memref<16x512xf32, #tpu.memory_space<vmem>>, vector<1x128xf32>
    %cst = arith.constant 0.000000e+00 : f32
    %3 = vector.broadcast %cst : f32 to vector<8x12xf32>
    %4 = tpu.concatenate %0, %3 in 1 : vector<8x4xf32>, vector<8x12xf32> -> vector<8x16xf32>
    %5 = arith.truncf %4 : vector<8x16xf32> to vector<8x16xbf16>
    %cst_5 = arith.constant dense<0.000000e+00> : vector<8x128xf32>
    %6 = tpu.matmul %5, %1, %cst_5 {dimension_numbers = #tpu.dot_dimension_numbers<[1], [0], [0], [1], [0, 0, 1, 1], [], []>} : vector<8x16xbf16>, vector<16x128xbf16>, vector<8x128xf32> -> vector<8x128xf32>
    %7 = vector.broadcast %2 : vector<1x128xf32> to vector<8x128xf32>
    %8 = arith.addf %6, %7 : vector<8x128xf32>
    %cst_6 = arith.constant 0.00999999977 : f32
    %9 = vector.broadcast %cst_6 : f32 to vector<8x128xf32>
    %10 = arith.mulf %9, %8 : vector<8x128xf32>
    %11 = arith.maximumf %8, %10 : vector<8x128xf32>
    %c16 = arith.constant 16 : index
    %c0_7 = arith.constant 0 : index
    %12 = vector.load %arg3[%c16, %c0_7] : memref<2016x512xbf16, #tpu.memory_space<vmem>>, vector<32x128xbf16>
    %c1 = arith.constant 1 : index
    %c0_8 = arith.constant 0 : index
    %13 = vector.load %arg4[%c1, %c0_8] : memref<16x512xf32, #tpu.memory_space<vmem>>, vector<1x128xf32>
    %14 = vector.extract_strided_slice %11 {offsets = [0, 0], sizes = [8, 32], strides = [1, 1]} : vector<8x128xf32> to vector<8x32xf32>
    %15 = arith.truncf %14 : vector<8x32xf32> to vector<8x32xbf16>
    %cst_9 = arith.constant dense<0.000000e+00> : vector<8x128xf32>
    %16 = tpu.matmul %15, %12, %cst_9 {dimension_numbers = #tpu.dot_dimension_numbers<[1], [0], [0], [1], [0, 0, 1, 1], [], []>} : vector<8x32xbf16>, vector<32x128xbf16>, vector<8x128xf32> -> vector<8x128xf32>
    %17 = vector.broadcast %13 : vector<1x128xf32> to vector<8x128xf32>
    %18 = arith.addf %16, %17 : vector<8x128xf32>
    %cst_10 = arith.constant 0.00999999977 : f32
    %19 = vector.broadcast %cst_10 : f32 to vector<8x128xf32>
    %20 = arith.mulf %19, %18 : vector<8x128xf32>
    %21 = arith.maximumf %18, %20 : vector<8x128xf32>
    %c48 = arith.constant 48 : index
    %c0_11 = arith.constant 0 : index
    %22 = vector.load %arg3[%c48, %c0_11] : memref<2016x512xbf16, #tpu.memory_space<vmem>>, vector<64x128xbf16>
    %c2 = arith.constant 2 : index
    %c0_12 = arith.constant 0 : index
    %23 = vector.load %arg4[%c2, %c0_12] : memref<16x512xf32, #tpu.memory_space<vmem>>, vector<1x128xf32>
    %24 = vector.extract_strided_slice %21 {offsets = [0, 0], sizes = [8, 64], strides = [1, 1]} : vector<8x128xf32> to vector<8x64xf32>
    %25 = arith.truncf %24 : vector<8x64xf32> to vector<8x64xbf16>
    %cst_13 = arith.constant dense<0.000000e+00> : vector<8x128xf32>
    %26 = tpu.matmul %25, %22, %cst_13 {dimension_numbers = #tpu.dot_dimension_numbers<[1], [0], [0], [1], [0, 0, 1, 1], [], []>} : vector<8x64xbf16>, vector<64x128xbf16>, vector<8x128xf32> -> vector<8x128xf32>
    %27 = vector.broadcast %23 : vector<1x128xf32> to vector<8x128xf32>
    %28 = arith.addf %26, %27 : vector<8x128xf32>
    %cst_14 = arith.constant 0.00999999977 : f32
    %29 = vector.broadcast %cst_14 : f32 to vector<8x128xf32>
    %30 = arith.mulf %29, %28 : vector<8x128xf32>
    %31 = arith.maximumf %28, %30 : vector<8x128xf32>
    %c112 = arith.constant 112 : index
    %c0_15 = arith.constant 0 : index
    %32 = vector.load %arg3[%c112, %c0_15] : memref<2016x512xbf16, #tpu.memory_space<vmem>>, vector<128x256xbf16>
    %c3 = arith.constant 3 : index
    %c0_16 = arith.constant 0 : index
    %33 = vector.load %arg4[%c3, %c0_16] : memref<16x512xf32, #tpu.memory_space<vmem>>, vector<1x256xf32>
    %34 = arith.truncf %31 : vector<8x128xf32> to vector<8x128xbf16>
    %cst_17 = arith.constant dense<0.000000e+00> : vector<8x256xf32>
    %35 = tpu.matmul %34, %32, %cst_17 {dimension_numbers = #tpu.dot_dimension_numbers<[1], [0], [0], [1], [0, 0, 1, 1], [], []>} : vector<8x128xbf16>, vector<128x256xbf16>, vector<8x256xf32> -> vector<8x256xf32>
    %36 = vector.broadcast %33 : vector<1x256xf32> to vector<8x256xf32>
    %37 = arith.addf %35, %36 : vector<8x256xf32>
    %cst_18 = arith.constant 0.00999999977 : f32
    %38 = vector.broadcast %cst_18 : f32 to vector<8x256xf32>
    %39 = arith.mulf %38, %37 : vector<8x256xf32>
    %40 = arith.maximumf %37, %39 : vector<8x256xf32>
    %c240 = arith.constant 240 : index
    %c0_19 = arith.constant 0 : index
    %41 = vector.load %arg3[%c240, %c0_19] : memref<2016x512xbf16, #tpu.memory_space<vmem>>, vector<256x512xbf16>
    %c4 = arith.constant 4 : index
    %c0_20 = arith.constant 0 : index
    %42 = vector.load %arg4[%c4, %c0_20] : memref<16x512xf32, #tpu.memory_space<vmem>>, vector<1x512xf32>
    %43 = arith.truncf %40 : vector<8x256xf32> to vector<8x256xbf16>
    %cst_21 = arith.constant dense<0.000000e+00> : vector<8x512xf32>
    %44 = tpu.matmul %43, %41, %cst_21 {dimension_numbers = #tpu.dot_dimension_numbers<[1], [0], [0], [1], [0, 0, 1, 1], [], []>} : vector<8x256xbf16>, vector<256x512xbf16>, vector<8x512xf32> -> vector<8x512xf32>
    %45 = vector.broadcast %42 : vector<1x512xf32> to vector<8x512xf32>
    %46 = arith.addf %44, %45 : vector<8x512xf32>
    %cst_22 = arith.constant 0.00999999977 : f32
    %47 = vector.broadcast %cst_22 : f32 to vector<8x512xf32>
    %48 = arith.mulf %47, %46 : vector<8x512xf32>
    %49 = arith.maximumf %46, %48 : vector<8x512xf32>
    %c496 = arith.constant 496 : index
    %c0_23 = arith.constant 0 : index
    %50 = vector.load %arg3[%c496, %c0_23] : memref<2016x512xbf16, #tpu.memory_space<vmem>>, vector<512x128xbf16>
    %c5 = arith.constant 5 : index
    %c0_24 = arith.constant 0 : index
    %51 = vector.load %arg4[%c5, %c0_24] : memref<16x512xf32, #tpu.memory_space<vmem>>, vector<1x128xf32>
    %52 = arith.truncf %49 : vector<8x512xf32> to vector<8x512xbf16>
    %cst_25 = arith.constant dense<0.000000e+00> : vector<8x128xf32>
    %53 = tpu.matmul %52, %50, %cst_25 {dimension_numbers = #tpu.dot_dimension_numbers<[1], [0], [0], [1], [0, 0, 1, 1], [], []>} : vector<8x512xbf16>, vector<512x128xbf16>, vector<8x128xf32> -> vector<8x128xf32>
    %54 = vector.broadcast %51 : vector<1x128xf32> to vector<8x128xf32>
    %55 = arith.addf %53, %54 : vector<8x128xf32>
    %56 = vector.extract_strided_slice %55 {offsets = [0, 0], sizes = [8, 8], strides = [1, 1]} : vector<8x128xf32> to vector<8x8xf32>
    %57 = vector.extract_strided_slice %55 {offsets = [0, 8], sizes = [8, 8], strides = [1, 1]} : vector<8x128xf32> to vector<8x8xf32>
    %c0_26 = arith.constant 0 : index
    %c0_27 = arith.constant 0 : index
    %58 = vector.load %arg2[%c0_26, %c0_27] : memref<8x8xf32, #tpu.memory_space<vmem>>, vector<8x8xf32>
    %cst_28 = arith.constant 5.000000e-01 : f32
    %59 = vector.broadcast %cst_28 : f32 to vector<8x8xf32>
    %60 = arith.mulf %59, %57 : vector<8x8xf32>
    %61 = math.exp %60 : vector<8x8xf32>
    %62 = arith.mulf %58, %61 : vector<8x8xf32>
    %63 = arith.addf %62, %56 : vector<8x8xf32>
    %c1008 = arith.constant 1008 : index
    %c0_29 = arith.constant 0 : index
    %64 = vector.load %arg3[%c1008, %c0_29] : memref<2016x512xbf16, #tpu.memory_space<vmem>>, vector<16x512xbf16>
    %c6 = arith.constant 6 : index
    %c0_30 = arith.constant 0 : index
    %65 = vector.load %arg4[%c6, %c0_30] : memref<16x512xf32, #tpu.memory_space<vmem>>, vector<1x512xf32>
    %cst_31 = arith.constant 0.000000e+00 : f32
    %66 = vector.broadcast %cst_31 : f32 to vector<8x8xf32>
    %67 = tpu.concatenate %63, %66 in 1 : vector<8x8xf32>, vector<8x8xf32> -> vector<8x16xf32>
    %68 = arith.truncf %67 : vector<8x16xf32> to vector<8x16xbf16>
    %cst_32 = arith.constant dense<0.000000e+00> : vector<8x512xf32>
    %69 = tpu.matmul %68, %64, %cst_32 {dimension_numbers = #tpu.dot_dimension_numbers<[1], [0], [0], [1], [0, 0, 1, 1], [], []>} : vector<8x16xbf16>, vector<16x512xbf16>, vector<8x512xf32> -> vector<8x512xf32>
    %70 = vector.broadcast %65 : vector<1x512xf32> to vector<8x512xf32>
    %71 = arith.addf %69, %70 : vector<8x512xf32>
    %c1024 = arith.constant 1024 : index
    %c0_33 = arith.constant 0 : index
    %72 = vector.load %arg3[%c1024, %c0_33] : memref<2016x512xbf16, #tpu.memory_space<vmem>>, vector<512x256xbf16>
    %c7 = arith.constant 7 : index
    %c0_34 = arith.constant 0 : index
    %73 = vector.load %arg4[%c7, %c0_34] : memref<16x512xf32, #tpu.memory_space<vmem>>, vector<1x256xf32>
    %74 = arith.truncf %71 : vector<8x512xf32> to vector<8x512xbf16>
    %cst_35 = arith.constant dense<0.000000e+00> : vector<8x256xf32>
    %75 = tpu.matmul %74, %72, %cst_35 {dimension_numbers = #tpu.dot_dimension_numbers<[1], [0], [0], [1], [0, 0, 1, 1], [], []>} : vector<8x512xbf16>, vector<512x256xbf16>, vector<8x256xf32> -> vector<8x256xf32>
    %76 = vector.broadcast %73 : vector<1x256xf32> to vector<8x256xf32>
    %77 = arith.addf %75, %76 : vector<8x256xf32>
    %cst_36 = arith.constant 0.00999999977 : f32
    %78 = vector.broadcast %cst_36 : f32 to vector<8x256xf32>
    %79 = arith.mulf %78, %77 : vector<8x256xf32>
    %80 = arith.maximumf %77, %79 : vector<8x256xf32>
    %c1536 = arith.constant 1536 : index
    %c0_37 = arith.constant 0 : index
    %81 = vector.load %arg3[%c1536, %c0_37] : memref<2016x512xbf16, #tpu.memory_space<vmem>>, vector<256x128xbf16>
    %c8 = arith.constant 8 : index
    %c0_38 = arith.constant 0 : index
    %82 = vector.load %arg4[%c8, %c0_38] : memref<16x512xf32, #tpu.memory_space<vmem>>, vector<1x128xf32>
    %83 = arith.truncf %80 : vector<8x256xf32> to vector<8x256xbf16>
    %cst_39 = arith.constant dense<0.000000e+00> : vector<8x128xf32>
    %84 = tpu.matmul %83, %81, %cst_39 {dimension_numbers = #tpu.dot_dimension_numbers<[1], [0], [0], [1], [0, 0, 1, 1], [], []>} : vector<8x256xbf16>, vector<256x128xbf16>, vector<8x128xf32> -> vector<8x128xf32>
    %85 = vector.broadcast %82 : vector<1x128xf32> to vector<8x128xf32>
    %86 = arith.addf %84, %85 : vector<8x128xf32>
    %cst_40 = arith.constant 0.00999999977 : f32
    %87 = vector.broadcast %cst_40 : f32 to vector<8x128xf32>
    %88 = arith.mulf %87, %86 : vector<8x128xf32>
    %89 = arith.maximumf %86, %88 : vector<8x128xf32>
    %c1792 = arith.constant 1792 : index
    %c0_41 = arith.constant 0 : index
    %90 = vector.load %arg3[%c1792, %c0_41] : memref<2016x512xbf16, #tpu.memory_space<vmem>>, vector<128x128xbf16>
    %c9 = arith.constant 9 : index
    %c0_42 = arith.constant 0 : index
    %91 = vector.load %arg4[%c9, %c0_42] : memref<16x512xf32, #tpu.memory_space<vmem>>, vector<1x128xf32>
    %92 = arith.truncf %89 : vector<8x128xf32> to vector<8x128xbf16>
    %cst_43 = arith.constant dense<0.000000e+00> : vector<8x128xf32>
    %93 = tpu.matmul %92, %90, %cst_43 {dimension_numbers = #tpu.dot_dimension_numbers<[1], [0], [0], [1], [0, 0, 1, 1], [], []>} : vector<8x128xbf16>, vector<128x128xbf16>, vector<8x128xf32> -> vector<8x128xf32>
    %94 = vector.broadcast %91 : vector<1x128xf32> to vector<8x128xf32>
    %95 = arith.addf %93, %94 : vector<8x128xf32>
    %cst_44 = arith.constant 0.00999999977 : f32
    %96 = vector.broadcast %cst_44 : f32 to vector<8x128xf32>
    %97 = arith.mulf %96, %95 : vector<8x128xf32>
    %98 = arith.maximumf %95, %97 : vector<8x128xf32>
    %c1920 = arith.constant 1920 : index
    %c0_45 = arith.constant 0 : index
    %99 = vector.load %arg3[%c1920, %c0_45] : memref<2016x512xbf16, #tpu.memory_space<vmem>>, vector<64x128xbf16>
    %c10 = arith.constant 10 : index
    %c0_46 = arith.constant 0 : index
    %100 = vector.load %arg4[%c10, %c0_46] : memref<16x512xf32, #tpu.memory_space<vmem>>, vector<1x128xf32>
    %101 = vector.extract_strided_slice %98 {offsets = [0, 0], sizes = [8, 64], strides = [1, 1]} : vector<8x128xf32> to vector<8x64xf32>
    %102 = arith.truncf %101 : vector<8x64xf32> to vector<8x64xbf16>
    %cst_47 = arith.constant dense<0.000000e+00> : vector<8x128xf32>
    %103 = tpu.matmul %102, %99, %cst_47 {dimension_numbers = #tpu.dot_dimension_numbers<[1], [0], [0], [1], [0, 0, 1, 1], [], []>} : vector<8x64xbf16>, vector<64x128xbf16>, vector<8x128xf32> -> vector<8x128xf32>
    %104 = vector.broadcast %100 : vector<1x128xf32> to vector<8x128xf32>
    %105 = arith.addf %103, %104 : vector<8x128xf32>
    %cst_48 = arith.constant 0.00999999977 : f32
    %106 = vector.broadcast %cst_48 : f32 to vector<8x128xf32>
    %107 = arith.mulf %106, %105 : vector<8x128xf32>
    %108 = arith.maximumf %105, %107 : vector<8x128xf32>
    %c1984 = arith.constant 1984 : index
    %c0_49 = arith.constant 0 : index
    %109 = vector.load %arg3[%c1984, %c0_49] : memref<2016x512xbf16, #tpu.memory_space<vmem>>, vector<32x128xbf16>
    %c11 = arith.constant 11 : index
    %c0_50 = arith.constant 0 : index
    %110 = vector.load %arg4[%c11, %c0_50] : memref<16x512xf32, #tpu.memory_space<vmem>>, vector<1x128xf32>
    %111 = vector.extract_strided_slice %108 {offsets = [0, 0], sizes = [8, 32], strides = [1, 1]} : vector<8x128xf32> to vector<8x32xf32>
    %112 = arith.truncf %111 : vector<8x32xf32> to vector<8x32xbf16>
    %cst_51 = arith.constant dense<0.000000e+00> : vector<8x128xf32>
    %113 = tpu.matmul %112, %109, %cst_51 {dimension_numbers = #tpu.dot_dimension_numbers<[1], [0], [0], [1], [0, 0, 1, 1], [], []>} : vector<8x32xbf16>, vector<32x128xbf16>, vector<8x128xf32> -> vector<8x128xf32>
    %114 = vector.broadcast %110 : vector<1x128xf32> to vector<8x128xf32>
    %115 = arith.addf %113, %114 : vector<8x128xf32>
    %116 = vector.extract_strided_slice %115 {offsets = [0, 0], sizes = [8, 4], strides = [1, 1]} : vector<8x128xf32> to vector<8x4xf32>
    %cst_52 = arith.constant 0.000000e+00 : f32
    %117 = vector.broadcast %cst_52 : f32 to vector<8x108xf32>
    %118 = tpu.concatenate %116, %56, %57, %117 in 1 : vector<8x4xf32>, vector<8x8xf32>, vector<8x8xf32>, vector<8x108xf32> -> vector<8x128xf32>
    %c0_53 = arith.constant 0 : index
    %c0_54 = arith.constant 0 : index
    %119 = vector.load %arg5[%c0_53, %c0_54] : memref<8x128xf32, #tpu.memory_space<vmem>>, vector<8x128xf32>
    tpu.vector_store %arg5[%c0_53, %c0_54], %118 {strides = array<i32>} : memref<8x128xf32, #tpu.memory_space<vmem>>, vector<8x128xf32>,
    return
  }
  func.func @transform_0(%arg0: i32) -> (i32, i32) {
    %c0_i32 = arith.constant 0 : i32
    %c0_i32_0 = arith.constant 0 : i32
    return %arg0, %c0_i32 : i32, i32
  }
  func.func @transform_1(%arg0: i32) -> (i32, i32) {
    %c0_i32 = arith.constant 0 : i32
    %c0_i32_0 = arith.constant 0 : i32
    return %arg0, %c0_i32 : i32, i32
  }
  func.func @transform_2(%arg0: i32) -> (i32, i32) {
    %c0_i32 = arith.constant 0 : i32
    %c0_i32_0 = arith.constant 0 : i32
    %c0_i32_1 = arith.constant 0 : i32
    return %c0_i32, %c0_i32_0 : i32, i32
  }
  func.func @transform_3(%arg0: i32) -> (i32, i32) {
    %c0_i32 = arith.constant 0 : i32
    %c0_i32_0 = arith.constant 0 : i32
    %c0_i32_1 = arith.constant 0 : i32
    return %c0_i32, %c0_i32_0 : i32, i32
  }
  func.func @transform_4(%arg0: i32) -> (i32, i32) {
    %c0_i32 = arith.constant 0 : i32
    %c0_i32_0 = arith.constant 0 : i32
    return %arg0, %c0_i32 : i32, i32
  }
}

</mosaic_0001>

<llo_original>
// kernel: vae_forward.1
$region0: #{vae_forward.1}
  #allocation0 [shape = 'u32[]', space=smem, size = 0x4, offset = 0x4, fixed_abs, tag = 'smem constant byte address 0x4 - core index']
  #allocation1 [shape = 'u32[144,128]{1,0:T(1,128)}', space=vmem, size = 0x12000, scoped, tag = 'internal scratch']
  %s0 = inlined_call_operand.vmem [shape: f32[8,4], index: 0, kind: input, shape index: {}]
  %s1 = inlined_call_operand.hbm [shape: f32[8,8], index: 1, kind: input, shape index: {}]
  %s2 = inlined_call_operand.hbm [shape: bf16[2016,512], index: 2, kind: input, shape index: {}]
  %s3 = inlined_call_operand.hbm [shape: f32[16,512], index: 3, kind: input, shape index: {}]
  %s4 = inlined_call_operand.vmem [shape: f32[8,128], index: 4, kind: output, shape index: {}]
  %s5 = sld [smem:[#allocation0]]
  $region38: #{vae_forward.1} parent=0
    _
  %s7 = ssub.s32 1, %s5
  %s8 = scalar_select 0, %s7, %s5
  $region1: #{vae_forward.1} parent=0
    #allocation2 [shape = 'u8[4096]{0}', space=vmem, size = 0x1000, scoped, tag = 'input window, operand 1, single buffered']
    #allocation3 [shape = 's32[1]{0}', space=sflag, size = 0x4, scoped, tag = 'scoped memory for vae_forward.1']
    #allocation4 [shape = 'u8[2064384]{0}', space=vmem, size = 0x1f8000, scoped, tag = 'input window, operand 2, single buffered']
    #allocation5 [shape = 's32[1]{0}', space=sflag, size = 0x4, scoped, tag = 'scoped memory for vae_forward.1']
    #allocation6 [shape = 'u8[32768]{0}', space=vmem, size = 0x8000, scoped, tag = 'input window, operand 3, single buffered']
    %9 = vsyncpa [#allocation3], 0
    %10 = vsyncpa [#allocation5], 0
    // Predicated region
    $region2: #{vae_forward.1} parent=1 // pred_check
      _
    $region3: #{vae_forward.1} parent=1 // pred_check_branch
      %12 = sbr.rel (0) target = $region5
    $region4: #{vae_forward.1} parent=1 // pred_region
      _
    $region5: #{vae_forward.1} parent=1 // pred_fallthru
      _
    // Predicated region
    $region6: #{vae_forward.1} parent=1 // pred_check
      _
    $region7: #{vae_forward.1} parent=1 // pred_check_branch
      %14 = sbr.rel (0) target = $region9
    $region8: #{vae_forward.1} parent=1 // pred_region
      %s16 = ssub.s32 128, 128
      %17 = vsyncadd [#allocation3], %s16
      %s19 = sshll.u32 [#allocation2], 4
      %s20 = int_to_ptr.vmem [resolvable:$true] %s19
      %22 = dma.hbm_to_vmem [thread:$0]  %s1, 128, %s20, [#allocation3]
    $region9: #{vae_forward.1} parent=1 // pred_fallthru
      _
    // Predicated region
    $region10: #{vae_forward.1} parent=1 // pred_check
      _
    $region11: #{vae_forward.1} parent=1 // pred_check_branch
      %24 = sbr.rel (0) target = $region13
    $region12: #{vae_forward.1} parent=1 // pred_region
      %s26 = ssub.s32 64512, 64512
      %27 = vsyncadd [#allocation5], %s26
      %s28 = sshll.u32 [#allocation4], 4
      %s29 = int_to_ptr.vmem [resolvable:$true] %s28
      %34 = dma.hbm_to_vmem [thread:$0]  %s2, 64512, %s29, [#allocation5], 256, 256, 16
    $region13: #{vae_forward.1} parent=1 // pred_fallthru
      _
    // Predicated region
    $region14: #{vae_forward.1} parent=1 // pred_check
      _
    $region15: #{vae_forward.1} parent=1 // pred_check_branch
      %36 = sbr.rel (0) target = $region17
    $region16: #{vae_forward.1} parent=1 // pred_region
      %s38 = ssub.s32 1024, 1024
      %39 = vsyncadd [#allocation5], %s38
      %s40 = sshll.u32 [#allocation6], 4
      %s41 = int_to_ptr.vmem [resolvable:$true] %s40
      %46 = dma.hbm_to_vmem [thread:$0]  %s3, 1024, %s41, [#allocation5], 512, 512, 32
    $region17: #{vae_forward.1} parent=1 // pred_fallthru
      _
    // Predicated region
    $region18: #{vae_forward.1} parent=1 // pred_check
      _
    $region19: #{vae_forward.1} parent=1 // pred_check_branch
      %48 = sbr.rel (0) target = $region21
    $region20: #{vae_forward.1} parent=1 // pred_region
      %49 = dma.done [#allocation3], 128
    $region21: #{vae_forward.1} parent=1 // pred_fallthru
      _
    // Predicated region
    $region22: #{vae_forward.1} parent=1 // pred_check
      _
    $region23: #{vae_forward.1} parent=1 // pred_check_branch
      %51 = sbr.rel (0) target = $region25
    $region24: #{vae_forward.1} parent=1 // pred_region
      %52 = dma.done [#allocation5], 64512
    $region25: #{vae_forward.1} parent=1 // pred_fallthru
      _
    // Predicated region
    $region26: #{vae_forward.1} parent=1 // pred_check
      _
    $region27: #{vae_forward.1} parent=1 // pred_check_branch
      %54 = sbr.rel (0) target = $region29
    $region28: #{vae_forward.1} parent=1 // pred_region
      %55 = dma.done [#allocation5], 1024
    $region29: #{vae_forward.1} parent=1 // pred_fallthru
      _
    %v57 = vld [vmem:[%s0] sm:$0xff]
    %v58 = vld [vmem:[#allocation4] sm:$0xf]
    %v59 = vld [vmem:[#allocation4 + $0x10] sm:$0xf]
    %v60 = vld [vmem:[#allocation6] ss:$0 sm:$0xff]
    %vm61 = vcmask 31744
    %v62 = vsel %vm61, %v57, 0.0
    %v63 = vpack.c.bf16 %v62, %v62
    %v66 = vunpack.c.l.b16 %v58
    %v67 = vunpack.c.l.b16 %v59
    %v68 = vpack.c.b16 %v67, %v66
    %vm70 = vcmask 130048
    %v72 = vsel %vm70, %v63, 0
    %74 = vmatprep.subr.bf16.mxu0 0
    %75 = vmatpush1.bf16.msra.mxu0 %v68
    %76 = vmatprep.subr.bf16.mxu0 0
    %77 = vmatpush1.bf16.msra.mxu0 0
    %78 = vmatprep.subr.bf16.mxu0 0
    %79 = vmatpush1.bf16.msra.mxu0 0
    %80 = vmatprep.subr.bf16.mxu0 0
    %81 = vmatpush1.bf16.msra.mxu0 0
    %82 = vmatprep.subr.bf16.mxu0 0
    %83 = vmatpush1.bf16.msra.mxu0 0
    %84 = vmatprep.subr.bf16.mxu0 0
    %85 = vmatpush1.bf16.msra.mxu0 0
    %86 = vmatprep.subr.bf16.mxu0 0
    %87 = vmatpush1.bf16.msra.mxu0 0
    %88 = vmatprep.subr.bf16.mxu0 0
    %89 = vmatpush1.bf16.msra.mxu0 0
    %90 = vmatprep.subr.bf16.mxu0 0
    %91 = vmatpush1.bf16.msra.mxu0 0
    %92 = vmatprep.subr.bf16.mxu0 0
    %93 = vmatpush1.bf16.msra.mxu0 0
    %94 = vmatprep.subr.bf16.mxu0 0
    %95 = vmatpush1.bf16.msra.mxu0 0
    %96 = vmatprep.subr.bf16.mxu0 0
    %97 = vmatpush1.bf16.msra.mxu0 0
    %98 = vmatprep.subr.bf16.mxu0 0
    %99 = vmatpush1.bf16.msra.mxu0 0
    %100 = vmatprep.subr.bf16.mxu0 0
    %101 = vmatpush1.bf16.msra.mxu0 0
    %102 = vmatprep.subr.bf16.mxu0 0
    %103 = vmatpush1.bf16.msra.mxu0 0
    %104 = vmatprep.subr.bf16.mxu0 0
    %105 = vmatpush1.bf16.msra.mxu0 0
    %106 = vmatprep.mubr.bf16.mxu0 0
    %107 = vmatmul.mubr.bf16.gmra.mrb[0].mxu0 %v72
    %v108 = vpop.f32.mrb[0].mxu0
    %v109 = vadd.f32 %v60, %v108
    %v110 = vpop.f32.mrb[0].mxu0
    %v111 = vpop.f32.mrb[0].mxu0
    %v112 = vpop.f32.mrb[0].mxu0
    %113 = vdwg.mxu0
    %v114 = vmul.f32 %v109, 0.01
    %v115 = vmax.f32 %v109, %v114
    %v116 = vld [vmem:[#allocation4 + $0x20] sm:$0xf]
    %v117 = vld [vmem:[#allocation4 + $0x30] sm:$0xf]
    %v118 = vld [vmem:[#allocation4 + $0x40] sm:$0xf]
    %v119 = vld [vmem:[#allocation4 + $0x50] sm:$0xf]
    %v120 = vld [vmem:[#allocation6 + $0x1] ss:$0 sm:$0xff]
    %v121 = vpack.c.bf16 %v115, %v115
    %v126 = vunpack.c.l.b16 %v116
    %v127 = vunpack.c.l.b16 %v117
    %v128 = vunpack.c.l.b16 %v118
    %v129 = vunpack.c.l.b16 %v119
    %v130 = vpack.c.b16 %v127, %v126
    %v131 = vpack.c.b16 %v129, %v128
    %vm134 = vcmask 261120
    %v136 = vsel %vm134, %v121, 0
    %138 = vmatprep.subr.bf16.mxu0 0
    %139 = vmatpush1.bf16.msra.mxu0 %v130
    %140 = vmatprep.subr.bf16.mxu0 0
    %141 = vmatpush1.bf16.msra.mxu0 %v131
    %142 = vmatprep.subr.bf16.mxu0 0
    %143 = vmatpush1.bf16.msra.mxu0 0
    %144 = vmatprep.subr.bf16.mxu0 0
    %145 = vmatpush1.bf16.msra.mxu0 0
    %146 = vmatprep.subr.bf16.mxu0 0
    %147 = vmatpush1.bf16.msra.mxu0 0
    %148 = vmatprep.subr.bf16.mxu0 0
    %149 = vmatpush1.bf16.msra.mxu0 0
    %150 = vmatprep.subr.bf16.mxu0 0
    %151 = vmatpush1.bf16.msra.mxu0 0
    %152 = vmatprep.subr.bf16.mxu0 0
    %153 = vmatpush1.bf16.msra.mxu0 0
    %154 = vmatprep.subr.bf16.mxu0 0
    %155 = vmatpush1.bf16.msra.mxu0 0
    %156 = vmatprep.subr.bf16.mxu0 0
    %157 = vmatpush1.bf16.msra.mxu0 0
    %158 = vmatprep.subr.bf16.mxu0 0
    %159 = vmatpush1.bf16.msra.mxu0 0
    %160 = vmatprep.subr.bf16.mxu0 0
    %161 = vmatpush1.bf16.msra.mxu0 0
    %162 = vmatprep.subr.bf16.mxu0 0
    %163 = vmatpush1.bf16.msra.mxu0 0
    %164 = vmatprep.subr.bf16.mxu0 0
    %165 = vmatpush1.bf16.msra.mxu0 0
    %166 = vmatprep.subr.bf16.mxu0 0
    %167 = vmatpush1.bf16.msra.mxu0 0
    %168 = vmatprep.subr.bf16.mxu0 0
    %169 = vmatpush1.bf16.msra.mxu0 0
    %170 = vmatprep.mubr.bf16.mxu0 0
    %171 = vmatmul.mubr.bf16.gmra.mrb[0].mxu0 %v136
    %v172 = vpop.f32.mrb[0].mxu0
    %v173 = vadd.f32 %v120, %v172
    %v174 = vpop.f32.mrb[0].mxu0
    %v175 = vpop.f32.mrb[0].mxu0
    %v176 = vpop.f32.mrb[0].mxu0
    %177 = vdwg.mxu0
    %v178 = vmul.f32 %v173, 0.01
    %v179 = vmax.f32 %v173, %v178
    %v180 = vld [vmem:[#allocation4 + $0x60] sm:$0xf]
    %v181 = vld [vmem:[#allocation4 + $0x70] sm:$0xf]
    %v182 = vld [vmem:[#allocation4 + $0x80] sm:$0xf]
    %v183 = vld [vmem:[#allocation4 + $0x90] sm:$0xf]
    %v184 = vld [vmem:[#allocation4 + $0xa0] sm:$0xf]
    %v185 = vld [vmem:[#allocation4 + $0xb0] sm:$0xf]
    %v186 = vld [vmem:[#allocation4 + $0xc0] sm:$0xf]
    %v187 = vld [vmem:[#allocation4 + $0xd0] sm:$0xf]
    %v188 = vld [vmem:[#allocation6 + $0x2] ss:$0 sm:$0xff]
    %v189 = vpack.c.bf16 %v179, %v179
    %v198 = vunpack.c.l.b16 %v180
    %v199 = vunpack.c.l.b16 %v181
    %v200 = vunpack.c.l.b16 %v182
    %v201 = vunpack.c.l.b16 %v183
    %v202 = vunpack.c.l.b16 %v184
    %v203 = vunpack.c.l.b16 %v185
    %v204 = vunpack.c.l.b16 %v186
    %v205 = vunpack.c.l.b16 %v187
    %v206 = vpack.c.b16 %v199, %v198
    %v207 = vpack.c.b16 %v201, %v200
    %v208 = vpack.c.b16 %v203, %v202
    %v209 = vpack.c.b16 %v205, %v204
    %vm214 = vcmask 523264
    %v216 = vsel %vm214, %v189, 0
    %218 = vmatprep.subr.bf16.mxu0 0
    %219 = vmatpush1.bf16.msra.mxu0 %v206
    %220 = vmatprep.subr.bf16.mxu0 0
    %221 = vmatpush1.bf16.msra.mxu0 %v207
    %222 = vmatprep.subr.bf16.mxu0 0
    %223 = vmatpush1.bf16.msra.mxu0 %v208
    %224 = vmatprep.subr.bf16.mxu0 0
    %225 = vmatpush1.bf16.msra.mxu0 %v209
    %226 = vmatprep.subr.bf16.mxu0 0
    %227 = vmatpush1.bf16.msra.mxu0 0
    %228 = vmatprep.subr.bf16.mxu0 0
    %229 = vmatpush1.bf16.msra.mxu0 0
    %230 = vmatprep.subr.bf16.mxu0 0
    %231 = vmatpush1.bf16.msra.mxu0 0
    %232 = vmatprep.subr.bf16.mxu0 0
    %233 = vmatpush1.bf16.msra.mxu0 0
    %234 = vmatprep.subr.bf16.mxu0 0
    %235 = vmatpush1.bf16.msra.mxu0 0
    %236 = vmatprep.subr.bf16.mxu0 0
    %237 = vmatpush1.bf16.msra.mxu0 0
    %238 = vmatprep.subr.bf16.mxu0 0
    %239 = vmatpush1.bf16.msra.mxu0 0
    %240 = vmatprep.subr.bf16.mxu0 0
    %241 = vmatpush1.bf16.msra.mxu0 0
    %242 = vmatprep.subr.bf16.mxu0 0
    %243 = vmatpush1.bf16.msra.mxu0 0
    %244 = vmatprep.subr.bf16.mxu0 0
    %245 = vmatpush1.bf16.msra.mxu0 0
    %246 = vmatprep.subr.bf16.mxu0 0
    %247 = vmatpush1.bf16.msra.mxu0 0
    %248 = vmatprep.subr.bf16.mxu0 0
    %249 = vmatpush1.bf16.msra.mxu0 0
    %250 = vmatprep.mubr.bf16.mxu0 0
    %251 = vmatmul.mubr.bf16.gmra.mrb[0].mxu0 %v216
    %v252 = vpop.f32.mrb[0].mxu0
    %v253 = vadd.f32 %v188, %v252
    %v254 = vpop.f32.mrb[0].mxu0
    %v255 = vpop.f32.mrb[0].mxu0
    %v256 = vpop.f32.mrb[0].mxu0
    %257 = vdwg.mxu0
    %v258 = vmul.f32 %v253, 0.01
    %v259 = vmax.f32 %v253, %v258
    %v260 = vld [vmem:[#allocation4 + $0xe0] sm:$0xff]
    %v261 = vld [vmem:[#allocation4 + $0xf0] sm:$0xff]
    %v262 = vld [vmem:[#allocation4 + $0x100] sm:$0xff]
    %v263 = vld [vmem:[#allocation4 + $0x110] sm:$0xff]
    %v264 = vld [vmem:[#allocation4 + $0x120] sm:$0xff]
    %v265 = vld [vmem:[#allocation4 + $0x130] sm:$0xff]
    %v266 = vld [vmem:[#allocation4 + $0x140] sm:$0xff]
    %v267 = vld [vmem:[#allocation4 + $0x150] sm:$0xff]
    %v268 = vld [vmem:[#allocation4 + $0x160] sm:$0xff]
    %v269 = vld [vmem:[#allocation4 + $0x170] sm:$0xff]
    %v270 = vld [vmem:[#allocation4 + $0x180] sm:$0xff]
    %v271 = vld [vmem:[#allocation4 + $0x190] sm:$0xff]
    %v272 = vld [vmem:[#allocation4 + $0x1a0] sm:$0xff]
    %v273 = vld [vmem:[#allocation4 + $0x1b0] sm:$0xff]
    %v274 = vld [vmem:[#allocation4 + $0x1c0] sm:$0xff]
    %v275 = vld [vmem:[#allocation4 + $0x1d0] sm:$0xff]
    %s276 = scalar_lea.vmem [#allocation6], 3
    %v277 = vld [vmem:[%s276] ss:$8 sm:$0x3]
    %v278 = vpack.c.bf16 %v259, %v259
    %v280 = vlaneseq
    %v281 = vshrl.u32 %v280, 7
    %v282 = vsub.s32 0, %v281
    %v283 = vrot.slane %v277, %v282
    %v284 = vlaneseq
    %v285 = vshrl.u32 %v284, 7
    %v286 = vsub.s32 1, %v285
    %v287 = vrot.slane %v277, %v286
    %v306 = vunpack.c.l.b16 %v260
    %v307 = vunpack.c.h.b16 %v260
    %v308 = vunpack.c.l.b16 %v261
    %v309 = vunpack.c.h.b16 %v261
    %v310 = vunpack.c.l.b16 %v262
    %v311 = vunpack.c.h.b16 %v262
    %v312 = vunpack.c.l.b16 %v263
    %v313 = vunpack.c.h.b16 %v263
    %v314 = vunpack.c.l.b16 %v264
    %v315 = vunpack.c.h.b16 %v264
    %v316 = vunpack.c.l.b16 %v265
    %v317 = vunpack.c.h.b16 %v265
    %v318 = vunpack.c.l.b16 %v266
    %v319 = vunpack.c.h.b16 %v266
    %v320 = vunpack.c.l.b16 %v267
    %v321 = vunpack.c.h.b16 %v267
    %v322 = vunpack.c.l.b16 %v268
    %v323 = vunpack.c.h.b16 %v268
    %v324 = vunpack.c.l.b16 %v269
    %v325 = vunpack.c.h.b16 %v269
    %v326 = vunpack.c.l.b16 %v270
    %v327 = vunpack.c.h.b16 %v270
    %v328 = vunpack.c.l.b16 %v271
    %v329 = vunpack.c.h.b16 %v271
    %v330 = vunpack.c.l.b16 %v272
    %v331 = vunpack.c.h.b16 %v272
    %v332 = vunpack.c.l.b16 %v273
    %v333 = vunpack.c.h.b16 %v273
    %v334 = vunpack.c.l.b16 %v274
    %v335 = vunpack.c.h.b16 %v274
    %v336 = vunpack.c.l.b16 %v275
    %v337 = vunpack.c.h.b16 %v275
    %v338 = vpack.c.b16 %v308, %v306
    %v339 = vpack.c.b16 %v309, %v307
    %v340 = vpack.c.b16 %v312, %v310
    %v341 = vpack.c.b16 %v313, %v311
    %v342 = vpack.c.b16 %v316, %v314
    %v343 = vpack.c.b16 %v317, %v315
    %v344 = vpack.c.b16 %v320, %v318
    %v345 = vpack.c.b16 %v321, %v319
    %v346 = vpack.c.b16 %v324, %v322
    %v347 = vpack.c.b16 %v325, %v323
    %v348 = vpack.c.b16 %v328, %v326
    %v349 = vpack.c.b16 %v329, %v327
    %v350 = vpack.c.b16 %v332, %v330
    %v351 = vpack.c.b16 %v333, %v331
    %v352 = vpack.c.b16 %v336, %v334
    %v353 = vpack.c.b16 %v337, %v335
    %370 = vmatprep.subr.bf16.mxu0 %v339
    %371 = vmatpush1.bf16.msra.mxu0 %v338
    %372 = vmatprep.subr.bf16.mxu0 %v341
    %373 = vmatpush1.bf16.msra.mxu0 %v340
    %374 = vmatprep.subr.bf16.mxu0 %v343
    %375 = vmatpush1.bf16.msra.mxu0 %v342
    %376 = vmatprep.subr.bf16.mxu0 %v345
    %377 = vmatpush1.bf16.msra.mxu0 %v344
    %378 = vmatprep.subr.bf16.mxu0 %v347
    %379 = vmatpush1.bf16.msra.mxu0 %v346
    %380 = vmatprep.subr.bf16.mxu0 %v349
    %381 = vmatpush1.bf16.msra.mxu0 %v348
    %382 = vmatprep.subr.bf16.mxu0 %v351
    %383 = vmatpush1.bf16.msra.mxu0 %v350
    %384 = vmatprep.subr.bf16.mxu0 %v353
    %385 = vmatpush1.bf16.msra.mxu0 %v352
    %386 = vmatprep.subr.bf16.mxu0 0
    %387 = vmatpush1.bf16.msra.mxu0 0
    %388 = vmatprep.subr.bf16.mxu0 0
    %389 = vmatpush1.bf16.msra.mxu0 0
    %390 = vmatprep.subr.bf16.mxu0 0
    %391 = vmatpush1.bf16.msra.mxu0 0
    %392 = vmatprep.subr.bf16.mxu0 0
    %393 = vmatpush1.bf16.msra.mxu0 0
    %394 = vmatprep.subr.bf16.mxu0 0
    %395 = vmatpush1.bf16.msra.mxu0 0
    %396 = vmatprep.subr.bf16.mxu0 0
    %397 = vmatpush1.bf16.msra.mxu0 0
    %398 = vmatprep.subr.bf16.mxu0 0
    %399 = vmatpush1.bf16.msra.mxu0 0
    %400 = vmatprep.subr.bf16.mxu0 0
    %401 = vmatpush1.bf16.msra.mxu0 0
    %402 = vmatprep.mubr.bf16.mxu0 0
    %403 = vmatmul.mubr.bf16.gmra.mrb[0].mxu0 %v278
    %v404 = vpop.f32.mrb[0].mxu0
    %v405 = vadd.f32 %v283, %v404
    %v406 = vpop.f32.mrb[0].mxu0
    %v407 = vadd.f32 %v287, %v406
    %v408 = vpop.f32.mrb[0].mxu0
    %v409 = vpop.f32.mrb[0].mxu0
    %410 = vdwg.mxu0
    %v411 = vmul.f32 %v405, 0.01
    %v412 = vmul.f32 %v407, 0.01
    %v413 = vmax.f32 %v405, %v411
    %v414 = vmax.f32 %v407, %v412
    %v415 = vld [vmem:[#allocation4 + $0x1e0] sm:$0xff]
    %v416 = vld [vmem:[#allocation4 + $0x1e8] sm:$0xff]
    %v417 = vld [vmem:[#allocation4 + $0x1f0] sm:$0xff]
    %v418 = vld [vmem:[#allocation4 + $0x1f8] sm:$0xff]
    %v419 = vld [vmem:[#allocation4 + $0x200] sm:$0xff]
    %v420 = vld [vmem:[#allocation4 + $0x208] sm:$0xff]
    %v421 = vld [vmem:[#allocation4 + $0x210] sm:$0xff]
    %v422 = vld [vmem:[#allocation4 + $0x218] sm:$0xff]
    %v423 = vld [vmem:[#allocation4 + $0x220] sm:$0xff]
    %v424 = vld [vmem:[#allocation4 + $0x228] sm:$0xff]
    %v425 = vld [vmem:[#allocation4 + $0x230] sm:$0xff]
    %v426 = vld [vmem:[#allocation4 + $0x238] sm:$0xff]
    %v427 = vld [vmem:[#allocation4 + $0x240] sm:$0xff]
    %v428 = vld [vmem:[#allocation4 + $0x248] sm:$0xff]
    %v429 = vld [vmem:[#allocation4 + $0x250] sm:$0xff]
    %v430 = vld [vmem:[#allocation4 + $0x258] sm:$0xff]
    %v431 = vld [vmem:[#allocation4 + $0x260] sm:$0xff]
    %v432 = vld [vmem:[#allocation4 + $0x268] sm:$0xff]
    %v433 = vld [vmem:[#allocation4 + $0x270] sm:$0xff]
    %v434 = vld [vmem:[#allocation4 + $0x278] sm:$0xff]
    %v435 = vld [vmem:[#allocation4 + $0x280] sm:$0xff]
    %v436 = vld [vmem:[#allocation4 + $0x288] sm:$0xff]
    %v437 = vld [vmem:[#allocation4 + $0x290] sm:$0xff]
    %v438 = vld [vmem:[#allocation4 + $0x298] sm:$0xff]
    %v439 = vld [vmem:[#allocation4 + $0x2a0] sm:$0xff]
    %v440 = vld [vmem:[#allocation4 + $0x2a8] sm:$0xff]
    %v441 = vld [vmem:[#allocation4 + $0x2b0] sm:$0xff]
    %v442 = vld [vmem:[#allocation4 + $0x2b8] sm:$0xff]
    %v443 = vld [vmem:[#allocation4 + $0x2c0] sm:$0xff]
    %v444 = vld [vmem:[#allocation4 + $0x2c8] sm:$0xff]
    %v445 = vld [vmem:[#allocation4 + $0x2d0] sm:$0xff]
    %v446 = vld [vmem:[#allocation4 + $0x2d8] sm:$0xff]
    %v447 = vld [vmem:[#allocation4 + $0x2e0] sm:$0xff]
    %v448 = vld [vmem:[#allocation4 + $0x2e8] sm:$0xff]
    %v449 = vld [vmem:[#allocation4 + $0x2f0] sm:$0xff]
    %v450 = vld [vmem:[#allocation4 + $0x2f8] sm:$0xff]
    %v451 = vld [vmem:[#allocation4 + $0x300] sm:$0xff]
    %v452 = vld [vmem:[#allocation4 + $0x308] sm:$0xff]
    %v453 = vld [vmem:[#allocation4 + $0x310] sm:$0xff]
    %v454 = vld [vmem:[#allocation4 + $0x318] sm:$0xff]
    %v455 = vld [vmem:[#allocation4 + $0x320] sm:$0xff]
    %v456 = vld [vmem:[#allocation4 + $0x328] sm:$0xff]
    %v457 = vld [vmem:[#allocation4 + $0x330] sm:$0xff]
    %v458 = vld [vmem:[#allocation4 + $0x338] sm:$0xff]
    %v459 = vld [vmem:[#allocation4 + $0x340] sm:$0xff]
    %v460 = vld [vmem:[#allocation4 + $0x348] sm:$0xff]
    %v461 = vld [vmem:[#allocation4 + $0x350] sm:$0xff]
    %v462 = vld [vmem:[#allocation4 + $0x358] sm:$0xff]
    %v463 = vld [vmem:[#allocation4 + $0x360] sm:$0xff]
    %v464 = vld [vmem:[#allocation4 + $0x368] sm:$0xff]
    %v465 = vld [vmem:[#allocation4 + $0x370] sm:$0xff]
    %v466 = vld [vmem:[#allocation4 + $0x378] sm:$0xff]
    %v467 = vld [vmem:[#allocation4 + $0x380] sm:$0xff]
    %v468 = vld [vmem:[#allocation4 + $0x388] sm:$0xff]
    %v469 = vld [vmem:[#allocation4 + $0x390] sm:$0xff]
    %v470 = vld [vmem:[#allocation4 + $0x398] sm:$0xff]
    %v471 = vld [vmem:[#allocation4 + $0x3a0] sm:$0xff]
    %v472 = vld [vmem:[#allocation4 + $0x3a8] sm:$0xff]
    %v473 = vld [vmem:[#allocation4 + $0x3b0] sm:$0xff]
    %v474 = vld [vmem:[#allocation4 + $0x3b8] sm:$0xff]
    %v475 = vld [vmem:[#allocation4 + $0x3c0] sm:$0xff]
    %v476 = vld [vmem:[#allocation4 + $0x3c8] sm:$0xff]
    %v477 = vld [vmem:[#allocation4 + $0x3d0] sm:$0xff]
    %v478 = vld [vmem:[#allocation4 + $0x3d8] sm:$0xff]
    %s479 = scalar_lea.vmem [#allocation6], 4
    %v480 = vld [vmem:[%s479] ss:$8 sm:$0xf]
    %v481 = vpack.c.bf16 %v413, %v413
    %v482 = vpack.c.bf16 %v414, %v414
    %v484 = vlaneseq
    %v485 = vshrl.u32 %v484, 7
    %v486 = vsub.s32 0, %v485
    %v487 = vrot.slane %v480, %v486
    %v488 = vlaneseq
    %v489 = vshrl.u32 %v488, 7
    %v490 = vsub.s32 1, %v489
    %v491 = vrot.slane %v480, %v490
    %v492 = vlaneseq
    %v493 = vshrl.u32 %v492, 7
    %v494 = vsub.s32 2, %v493
    %v495 = vrot.slane %v480, %v494
    %v496 = vlaneseq
    %v497 = vshrl.u32 %v496, 7
    %v498 = vsub.s32 3, %v497
    %v499 = vrot.slane %v480, %v498
    %v568 = vunpack.c.l.b16 %v415
    %v569 = vunpack.c.h.b16 %v415
    %v570 = vunpack.c.l.b16 %v416
    %v571 = vunpack.c.h.b16 %v416
    %v572 = vunpack.c.l.b16 %v417
    %v573 = vunpack.c.h.b16 %v417
    %v574 = vunpack.c.l.b16 %v418
    %v575 = vunpack.c.h.b16 %v418
    %v576 = vunpack.c.l.b16 %v419
    %v577 = vunpack.c.h.b16 %v419
    %v578 = vunpack.c.l.b16 %v420
    %v579 = vunpack.c.h.b16 %v420
    %v580 = vunpack.c.l.b16 %v421
    %v581 = vunpack.c.h.b16 %v421
    %v582 = vunpack.c.l.b16 %v422
    %v583 = vunpack.c.h.b16 %v422
    %v584 = vunpack.c.l.b16 %v423
    %v585 = vunpack.c.h.b16 %v423
    %v586 = vunpack.c.l.b16 %v424
    %v587 = vunpack.c.h.b16 %v424
    %v588 = vunpack.c.l.b16 %v425
    %v589 = vunpack.c.h.b16 %v425
    %v590 = vunpack.c.l.b16 %v426
    %v591 = vunpack.c.h.b16 %v426
    %v592 = vunpack.c.l.b16 %v427
    %v593 = vunpack.c.h.b16 %v427
    %v594 = vunpack.c.l.b16 %v428
    %v595 = vunpack.c.h.b16 %v428
    %v596 = vunpack.c.l.b16 %v429
    %v597 = vunpack.c.h.b16 %v429
    %v598 = vunpack.c.l.b16 %v430
    %v599 = vunpack.c.h.b16 %v430
    %v600 = vunpack.c.l.b16 %v431
    %v601 = vunpack.c.h.b16 %v431
    %v602 = vunpack.c.l.b16 %v432
    %v603 = vunpack.c.h.b16 %v432
    %v604 = vunpack.c.l.b16 %v433
    %v605 = vunpack.c.h.b16 %v433
    %v606 = vunpack.c.l.b16 %v434
    %v607 = vunpack.c.h.b16 %v434
    %v608 = vunpack.c.l.b16 %v435
    %v609 = vunpack.c.h.b16 %v435
    %v610 = vunpack.c.l.b16 %v436
    %v611 = vunpack.c.h.b16 %v436
    %v612 = vunpack.c.l.b16 %v437
    %v613 = vunpack.c.h.b16 %v437
    %v614 = vunpack.c.l.b16 %v438
    %v615 = vunpack.c.h.b16 %v438
    %v616 = vunpack.c.l.b16 %v439
    %v617 = vunpack.c.h.b16 %v439
    %v618 = vunpack.c.l.b16 %v440
    %v619 = vunpack.c.h.b16 %v440
    %v620 = vunpack.c.l.b16 %v441
    %v621 = vunpack.c.h.b16 %v441
    %v622 = vunpack.c.l.b16 %v442
    %v623 = vunpack.c.h.b16 %v442
    %v624 = vunpack.c.l.b16 %v443
    %v625 = vunpack.c.h.b16 %v443
    %v626 = vunpack.c.l.b16 %v444
    %v627 = vunpack.c.h.b16 %v444
    %v628 = vunpack.c.l.b16 %v445
    %v629 = vunpack.c.h.b16 %v445
    %v630 = vunpack.c.l.b16 %v446
    %v631 = vunpack.c.h.b16 %v446
    %v632 = vunpack.c.l.b16 %v447
    %v633 = vunpack.c.h.b16 %v447
    %v634 = vunpack.c.l.b16 %v448
    %v635 = vunpack.c.h.b16 %v448
    %v636 = vunpack.c.l.b16 %v449
    %v637 = vunpack.c.h.b16 %v449
    %v638 = vunpack.c.l.b16 %v450
    %v639 = vunpack.c.h.b16 %v450
    %v640 = vunpack.c.l.b16 %v451
    %v641 = vunpack.c.h.b16 %v451
    %v642 = vunpack.c.l.b16 %v452
    %v643 = vunpack.c.h.b16 %v452
    %v644 = vunpack.c.l.b16 %v453
    %v645 = vunpack.c.h.b16 %v453
    %v646 = vunpack.c.l.b16 %v454
    %v647 = vunpack.c.h.b16 %v454
    %v648 = vunpack.c.l.b16 %v455
    %v649 = vunpack.c.h.b16 %v455
    %v650 = vunpack.c.l.b16 %v456
    %v651 = vunpack.c.h.b16 %v456
    %v652 = vunpack.c.l.b16 %v457
    %v653 = vunpack.c.h.b16 %v457
    %v654 = vunpack.c.l.b16 %v458
    %v655 = vunpack.c.h.b16 %v458
    %v656 = vunpack.c.l.b16 %v459
    %v657 = vunpack.c.h.b16 %v459
    %v658 = vunpack.c.l.b16 %v460
    %v659 = vunpack.c.h.b16 %v460
    %v660 = vunpack.c.l.b16 %v461
    %v661 = vunpack.c.h.b16 %v461
    %v662 = vunpack.c.l.b16 %v462
    %v663 = vunpack.c.h.b16 %v462
    %v664 = vunpack.c.l.b16 %v463
    %v665 = vunpack.c.h.b16 %v463
    %v666 = vunpack.c.l.b16 %v464
    %v667 = vunpack.c.h.b16 %v464
    %v668 = vunpack.c.l.b16 %v465
    %v669 = vunpack.c.h.b16 %v465
    %v670 = vunpack.c.l.b16 %v466
    %v671 = vunpack.c.h.b16 %v466
    %v672 = vunpack.c.l.b16 %v467
    %v673 = vunpack.c.h.b16 %v467
    %v674 = vunpack.c.l.b16 %v468
    %v675 = vunpack.c.h.b16 %v468
    %v676 = vunpack.c.l.b16 %v469
    %v677 = vunpack.c.h.b16 %v469
    %v678 = vunpack.c.l.b16 %v470
    %v679 = vunpack.c.h.b16 %v470
    %v680 = vunpack.c.l.b16 %v471
    %v681 = vunpack.c.h.b16 %v471
    %v682 = vunpack.c.l.b16 %v472
    %v683 = vunpack.c.h.b16 %v472
    %v684 = vunpack.c.l.b16 %v473
    %v685 = vunpack.c.h.b16 %v473
    %v686 = vunpack.c.l.b16 %v474
    %v687 = vunpack.c.h.b16 %v474
    %v688 = vunpack.c.l.b16 %v475
    %v689 = vunpack.c.h.b16 %v475
    %v690 = vunpack.c.l.b16 %v476
    %v691 = vunpack.c.h.b16 %v476
    %v692 = vunpack.c.l.b16 %v477
    %v693 = vunpack.c.h.b16 %v477
    %v694 = vunpack.c.l.b16 %v478
    %v695 = vunpack.c.h.b16 %v478
    %v696 = vpack.c.b16 %v572, %v568
    %v697 = vpack.c.b16 %v573, %v569
    %v698 = vpack.c.b16 %v574, %v570
    %v699 = vpack.c.b16 %v575, %v571
    %v700 = vpack.c.b16 %v580, %v576
    %v701 = vpack.c.b16 %v581, %v577
    %v702 = vpack.c.b16 %v582, %v578
    %v703 = vpack.c.b16 %v583, %v579
    %v704 = vpack.c.b16 %v588, %v584
    %v705 = vpack.c.b16 %v589, %v585
    %v706 = vpack.c.b16 %v590, %v586
    %v707 = vpack.c.b16 %v591, %v587
    %v708 = vpack.c.b16 %v596, %v592
    %v709 = vpack.c.b16 %v597, %v593
    %v710 = vpack.c.b16 %v598, %v594
    %v711 = vpack.c.b16 %v599, %v595
    %v712 = vpack.c.b16 %v604, %v600
    %v713 = vpack.c.b16 %v605, %v601
    %v714 = vpack.c.b16 %v606, %v602
    %v715 = vpack.c.b16 %v607, %v603
    %v716 = vpack.c.b16 %v612, %v608
    %v717 = vpack.c.b16 %v613, %v609
    %v718 = vpack.c.b16 %v614, %v610
    %v719 = vpack.c.b16 %v615, %v611
    %v720 = vpack.c.b16 %v620, %v616
    %v721 = vpack.c.b16 %v621, %v617
    %v722 = vpack.c.b16 %v622, %v618
    %v723 = vpack.c.b16 %v623, %v619
    %v724 = vpack.c.b16 %v628, %v624
    %v725 = vpack.c.b16 %v629, %v625
    %v726 = vpack.c.b16 %v630, %v626
    %v727 = vpack.c.b16 %v631, %v627
    %v728 = vpack.c.b16 %v636, %v632
    %v729 = vpack.c.b16 %v637, %v633
    %v730 = vpack.c.b16 %v638, %v634
    %v731 = vpack.c.b16 %v639, %v635
    %v732 = vpack.c.b16 %v644, %v640
    %v733 = vpack.c.b16 %v645, %v641
    %v734 = vpack.c.b16 %v646, %v642
    %v735 = vpack.c.b16 %v647, %v643
    %v736 = vpack.c.b16 %v652, %v648
    %v737 = vpack.c.b16 %v653, %v649
    %v738 = vpack.c.b16 %v654, %v650
    %v739 = vpack.c.b16 %v655, %v651
    %v740 = vpack.c.b16 %v660, %v656
    %v741 = vpack.c.b16 %v661, %v657
    %v742 = vpack.c.b16 %v662, %v658
    %v743 = vpack.c.b16 %v663, %v659
    %v744 = vpack.c.b16 %v668, %v664
    %v745 = vpack.c.b16 %v669, %v665
    %v746 = vpack.c.b16 %v670, %v666
    %v747 = vpack.c.b16 %v671, %v667
    %v748 = vpack.c.b16 %v676, %v672
    %v749 = vpack.c.b16 %v677, %v673
    %v750 = vpack.c.b16 %v678, %v674
    %v751 = vpack.c.b16 %v679, %v675
    %v752 = vpack.c.b16 %v684, %v680
    %v753 = vpack.c.b16 %v685, %v681
    %v754 = vpack.c.b16 %v686, %v682
    %v755 = vpack.c.b16 %v687, %v683
    %v756 = vpack.c.b16 %v692, %v688
    %v757 = vpack.c.b16 %v693, %v689
    %v758 = vpack.c.b16 %v694, %v690
    %v759 = vpack.c.b16 %v695, %v691
    %824 = vmatprep.subr.bf16.mxu0 %v697
    %825 = vmatpush1.bf16.msra.mxu0 %v696
    %826 = vmatprep.subr.bf16.mxu0 %v701
    %827 = vmatpush1.bf16.msra.mxu0 %v700
    %828 = vmatprep.subr.bf16.mxu0 %v705
    %829 = vmatpush1.bf16.msra.mxu0 %v704
    %830 = vmatprep.subr.bf16.mxu0 %v709
    %831 = vmatpush1.bf16.msra.mxu0 %v708
    %832 = vmatprep.subr.bf16.mxu0 %v713
    %833 = vmatpush1.bf16.msra.mxu0 %v712
    %834 = vmatprep.subr.bf16.mxu0 %v717
    %835 = vmatpush1.bf16.msra.mxu0 %v716
    %836 = vmatprep.subr.bf16.mxu0 %v721
    %837 = vmatpush1.bf16.msra.mxu0 %v720
    %838 = vmatprep.subr.bf16.mxu0 %v725
    %839 = vmatpush1.bf16.msra.mxu0 %v724
    %840 = vmatprep.subr.bf16.mxu0 %v729
    %841 = vmatpush1.bf16.msra.mxu0 %v728
    %842 = vmatprep.subr.bf16.mxu0 %v733
    %843 = vmatpush1.bf16.msra.mxu0 %v732
    %844 = vmatprep.subr.bf16.mxu0 %v737
    %845 = vmatpush1.bf16.msra.mxu0 %v736
    %846 = vmatprep.subr.bf16.mxu0 %v741
    %847 = vmatpush1.bf16.msra.mxu0 %v740
    %848 = vmatprep.subr.bf16.mxu0 %v745
    %849 = vmatpush1.bf16.msra.mxu0 %v744
    %850 = vmatprep.subr.bf16.mxu0 %v749
    %851 = vmatpush1.bf16.msra.mxu0 %v748
    %852 = vmatprep.subr.bf16.mxu0 %v753
    %853 = vmatpush1.bf16.msra.mxu0 %v752
    %854 = vmatprep.subr.bf16.mxu0 %v757
    %855 = vmatpush1.bf16.msra.mxu0 %v756
    %856 = vmatprep.mubr.bf16.mxu0 %v482
    %857 = vmatmul.mubr.bf16.gmra.mrb[0].mxu0 %v481
    %v858 = vpop.f32.mrb[0].mxu0
    %v859 = vadd.f32 %v487, %v858
    %v860 = vpop.f32.mrb[0].mxu0
    %v861 = vadd.f32 %v491, %v860
    %v862 = vpop.f32.mrb[0].mxu0
    %v863 = vpop.f32.mrb[0].mxu0
    %864 = vdwg.mxu0
    %865 = vmatprep.subr.bf16.mxu0 %v699
    %866 = vmatpush1.bf16.msra.mxu0 %v698
    %867 = vmatprep.subr.bf16.mxu0 %v703
    %868 = vmatpush1.bf16.msra.mxu0 %v702
    %869 = vmatprep.subr.bf16.mxu0 %v707
    %870 = vmatpush1.bf16.msra.mxu0 %v706
    %871 = vmatprep.subr.bf16.mxu0 %v711
    %872 = vmatpush1.bf16.msra.mxu0 %v710
    %873 = vmatprep.subr.bf16.mxu0 %v715
    %874 = vmatpush1.bf16.msra.mxu0 %v714
    %875 = vmatprep.subr.bf16.mxu0 %v719
    %876 = vmatpush1.bf16.msra.mxu0 %v718
    %877 = vmatprep.subr.bf16.mxu0 %v723
    %878 = vmatpush1.bf16.msra.mxu0 %v722
    %879 = vmatprep.subr.bf16.mxu0 %v727
    %880 = vmatpush1.bf16.msra.mxu0 %v726
    %881 = vmatprep.subr.bf16.mxu0 %v731
    %882 = vmatpush1.bf16.msra.mxu0 %v730
    %883 = vmatprep.subr.bf16.mxu0 %v735
    %884 = vmatpush1.bf16.msra.mxu0 %v734
    %885 = vmatprep.subr.bf16.mxu0 %v739
    %886 = vmatpush1.bf16.msra.mxu0 %v738
    %887 = vmatprep.subr.bf16.mxu0 %v743
    %888 = vmatpush1.bf16.msra.mxu0 %v742
    %889 = vmatprep.subr.bf16.mxu0 %v747
    %890 = vmatpush1.bf16.msra.mxu0 %v746
    %891 = vmatprep.subr.bf16.mxu0 %v751
    %892 = vmatpush1.bf16.msra.mxu0 %v750
    %893 = vmatprep.subr.bf16.mxu0 %v755
    %894 = vmatpush1.bf16.msra.mxu0 %v754
    %895 = vmatprep.subr.bf16.mxu0 %v759
    %896 = vmatpush1.bf16.msra.mxu0 %v758
    %897 = vmatprep.mubr.bf16.mxu0 %v482
    %898 = vmatmul.mubr.bf16.gmra.mrb[0].mxu0 %v481
    %v899 = vpop.f32.mrb[0].mxu0
    %v900 = vadd.f32 %v495, %v899
    %v901 = vpop.f32.mrb[0].mxu0
    %v902 = vadd.f32 %v499, %v901
    %v903 = vpop.f32.mrb[0].mxu0
    %v904 = vpop.f32.mrb[0].mxu0
    %905 = vdwg.mxu0
    %v906 = vmul.f32 %v859, 0.01
    %v907 = vmul.f32 %v861, 0.01
    %v908 = vmul.f32 %v900, 0.01
    %v909 = vmul.f32 %v902, 0.01
    %v910 = vmax.f32 %v859, %v906
    %v911 = vmax.f32 %v861, %v907
    %v912 = vmax.f32 %v900, %v908
    %v913 = vmax.f32 %v902, %v909
    %v914 = vld [vmem:[#allocation4 + $0x3e0] sm:$0xf]
    %v915 = vld [vmem:[#allocation4 + $0x3f0] sm:$0xf]
    %v916 = vld [vmem:[#allocation4 + $0x400] sm:$0xf]
    %v917 = vld [vmem:[#allocation4 + $0x410] sm:$0xf]
    %v918 = vld [vmem:[#allocation4 + $0x420] sm:$0xf]
    %v919 = vld [vmem:[#allocation4 + $0x430] sm:$0xf]
    %v920 = vld [vmem:[#allocation4 + $0x440] sm:$0xf]
    %v921 = vld [vmem:[#allocation4 + $0x450] sm:$0xf]
    %v922 = vld [vmem:[#allocation4 + $0x460] sm:$0xf]
    %v923 = vld [vmem:[#allocation4 + $0x470] sm:$0xf]
    %v924 = vld [vmem:[#allocation4 + $0x480] sm:$0xf]
    %v925 = vld [vmem:[#allocation4 + $0x490] sm:$0xf]
    %v926 = vld [vmem:[#allocation4 + $0x4a0] sm:$0xf]
    %v927 = vld [vmem:[#allocation4 + $0x4b0] sm:$0xf]
    %v928 = vld [vmem:[#allocation4 + $0x4c0] sm:$0xf]
    %v929 = vld [vmem:[#allocation4 + $0x4d0] sm:$0xf]
    %v930 = vld [vmem:[#allocation4 + $0x4e0] sm:$0xf]
    %v931 = vld [vmem:[#allocation4 + $0x4f0] sm:$0xf]
    %v932 = vld [vmem:[#allocation4 + $0x500] sm:$0xf]
    %v933 = vld [vmem:[#allocation4 + $0x510] sm:$0xf]
    %v934 = vld [vmem:[#allocation4 + $0x520] sm:$0xf]
    %v935 = vld [vmem:[#allocation4 + $0x530] sm:$0xf]
    %v936 = vld [vmem:[#allocation4 + $0x540] sm:$0xf]
    %v937 = vld [vmem:[#allocation4 + $0x550] sm:$0xf]
    %v938 = vld [vmem:[#allocation4 + $0x560] sm:$0xf]
    %v939 = vld [vmem:[#allocation4 + $0x570] sm:$0xf]
    %v940 = vld [vmem:[#allocation4 + $0x580] sm:$0xf]
    %v941 = vld [vmem:[#allocation4 + $0x590] sm:$0xf]
    %v942 = vld [vmem:[#allocation4 + $0x5a0] sm:$0xf]
    %v943 = vld [vmem:[#allocation4 + $0x5b0] sm:$0xf]
    %v944 = vld [vmem:[#allocation4 + $0x5c0] sm:$0xf]
    %v945 = vld [vmem:[#allocation4 + $0x5d0] sm:$0xf]
    %v946 = vld [vmem:[#allocation4 + $0x5e0] sm:$0xf]
    %v947 = vld [vmem:[#allocation4 + $0x5f0] sm:$0xf]
    %v948 = vld [vmem:[#allocation4 + $0x600] sm:$0xf]
    %v949 = vld [vmem:[#allocation4 + $0x610] sm:$0xf]
    %v950 = vld [vmem:[#allocation4 + $0x620] sm:$0xf]
    %v951 = vld [vmem:[#allocation4 + $0x630] sm:$0xf]
    %v952 = vld [vmem:[#allocation4 + $0x640] sm:$0xf]
    %v953 = vld [vmem:[#allocation4 + $0x650] sm:$0xf]
    %v954 = vld [vmem:[#allocation4 + $0x660] sm:$0xf]
    %v955 = vld [vmem:[#allocation4 + $0x670] sm:$0xf]
    %v956 = vld [vmem:[#allocation4 + $0x680] sm:$0xf]
    %v957 = vld [vmem:[#allocation4 + $0x690] sm:$0xf]
    %v958 = vld [vmem:[#allocation4 + $0x6a0] sm:$0xf]
    %v959 = vld [vmem:[#allocation4 + $0x6b0] sm:$0xf]
    %v960 = vld [vmem:[#allocation4 + $0x6c0] sm:$0xf]
    %v961 = vld [vmem:[#allocation4 + $0x6d0] sm:$0xf]
    %v962 = vld [vmem:[#allocation4 + $0x6e0] sm:$0xf]
    %v963 = vld [vmem:[#allocation4 + $0x6f0] sm:$0xf]
    %v964 = vld [vmem:[#allocation4 + $0x700] sm:$0xf]
    %v965 = vld [vmem:[#allocation4 + $0x710] sm:$0xf]
    %v966 = vld [vmem:[#allocation4 + $0x720] sm:$0xf]
    %v967 = vld [vmem:[#allocation4 + $0x730] sm:$0xf]
    %v968 = vld [vmem:[#allocation4 + $0x740] sm:$0xf]
    %v969 = vld [vmem:[#allocation4 + $0x750] sm:$0xf]
    %v970 = vld [vmem:[#allocation4 + $0x760] sm:$0xf]
    %v971 = vld [vmem:[#allocation4 + $0x770] sm:$0xf]
    %v972 = vld [vmem:[#allocation4 + $0x780] sm:$0xf]
    %v973 = vld [vmem:[#allocation4 + $0x790] sm:$0xf]
    %v974 = vld [vmem:[#allocation4 + $0x7a0] sm:$0xf]
    %v975 = vld [vmem:[#allocation4 + $0x7b0] sm:$0xf]
    %v976 = vld [vmem:[#allocation4 + $0x7c0] sm:$0xf]
    %v977 = vld [vmem:[#allocation4 + $0x7d0] sm:$0xf]
    %v978 = vld [vmem:[#allocation6 + $0x5] ss:$0 sm:$0xff]
    %v979 = vpack.c.bf16 %v910, %v910
    %v980 = vpack.c.bf16 %v911, %v911
    %v981 = vpack.c.bf16 %v912, %v912
    %v982 = vpack.c.bf16 %v913, %v913
    %v1047 = vunpack.c.l.b16 %v914
    %v1048 = vunpack.c.l.b16 %v915
    %v1049 = vunpack.c.l.b16 %v916
    %v1050 = vunpack.c.l.b16 %v917
    %v1051 = vunpack.c.l.b16 %v918
    %v1052 = vunpack.c.l.b16 %v919
    %v1053 = vunpack.c.l.b16 %v920
    %v1054 = vunpack.c.l.b16 %v921
    %v1055 = vunpack.c.l.b16 %v922
    %v1056 = vunpack.c.l.b16 %v923
    %v1057 = vunpack.c.l.b16 %v924
    %v1058 = vunpack.c.l.b16 %v925
    %v1059 = vunpack.c.l.b16 %v926
    %v1060 = vunpack.c.l.b16 %v927
    %v1061 = vunpack.c.l.b16 %v928
    %v1062 = vunpack.c.l.b16 %v929
    %v1063 = vunpack.c.l.b16 %v930
    %v1064 = vunpack.c.l.b16 %v931
    %v1065 = vunpack.c.l.b16 %v932
    %v1066 = vunpack.c.l.b16 %v933
    %v1067 = vunpack.c.l.b16 %v934
    %v1068 = vunpack.c.l.b16 %v935
    %v1069 = vunpack.c.l.b16 %v936
    %v1070 = vunpack.c.l.b16 %v937
    %v1071 = vunpack.c.l.b16 %v938
    %v1072 = vunpack.c.l.b16 %v939
    %v1073 = vunpack.c.l.b16 %v940
    %v1074 = vunpack.c.l.b16 %v941
    %v1075 = vunpack.c.l.b16 %v942
    %v1076 = vunpack.c.l.b16 %v943
    %v1077 = vunpack.c.l.b16 %v944
    %v1078 = vunpack.c.l.b16 %v945
    %v1079 = vunpack.c.l.b16 %v946
    %v1080 = vunpack.c.l.b16 %v947
    %v1081 = vunpack.c.l.b16 %v948
    %v1082 = vunpack.c.l.b16 %v949
    %v1083 = vunpack.c.l.b16 %v950
    %v1084 = vunpack.c.l.b16 %v951
    %v1085 = vunpack.c.l.b16 %v952
    %v1086 = vunpack.c.l.b16 %v953
    %v1087 = vunpack.c.l.b16 %v954
    %v1088 = vunpack.c.l.b16 %v955
    %v1089 = vunpack.c.l.b16 %v956
    %v1090 = vunpack.c.l.b16 %v957
    %v1091 = vunpack.c.l.b16 %v958
    %v1092 = vunpack.c.l.b16 %v959
    %v1093 = vunpack.c.l.b16 %v960
    %v1094 = vunpack.c.l.b16 %v961
    %v1095 = vunpack.c.l.b16 %v962
    %v1096 = vunpack.c.l.b16 %v963
    %v1097 = vunpack.c.l.b16 %v964
    %v1098 = vunpack.c.l.b16 %v965
    %v1099 = vunpack.c.l.b16 %v966
    %v1100 = vunpack.c.l.b16 %v967
    %v1101 = vunpack.c.l.b16 %v968
    %v1102 = vunpack.c.l.b16 %v969
    %v1103 = vunpack.c.l.b16 %v970
    %v1104 = vunpack.c.l.b16 %v971
    %v1105 = vunpack.c.l.b16 %v972
    %v1106 = vunpack.c.l.b16 %v973
    %v1107 = vunpack.c.l.b16 %v974
    %v1108 = vunpack.c.l.b16 %v975
    %v1109 = vunpack.c.l.b16 %v976
    %v1110 = vunpack.c.l.b16 %v977
    %v1111 = vpack.c.b16 %v1048, %v1047
    %v1112 = vpack.c.b16 %v1050, %v1049
    %v1113 = vpack.c.b16 %v1052, %v1051
    %v1114 = vpack.c.b16 %v1054, %v1053
    %v1115 = vpack.c.b16 %v1056, %v1055
    %v1116 = vpack.c.b16 %v1058, %v1057
    %v1117 = vpack.c.b16 %v1060, %v1059
    %v1118 = vpack.c.b16 %v1062, %v1061
    %v1119 = vpack.c.b16 %v1064, %v1063
    %v1120 = vpack.c.b16 %v1066, %v1065
    %v1121 = vpack.c.b16 %v1068, %v1067
    %v1122 = vpack.c.b16 %v1070, %v1069
    %v1123 = vpack.c.b16 %v1072, %v1071
    %v1124 = vpack.c.b16 %v1074, %v1073
    %v1125 = vpack.c.b16 %v1076, %v1075
    %v1126 = vpack.c.b16 %v1078, %v1077
    %v1127 = vpack.c.b16 %v1080, %v1079
    %v1128 = vpack.c.b16 %v1082, %v1081
    %v1129 = vpack.c.b16 %v1084, %v1083
    %v1130 = vpack.c.b16 %v1086, %v1085
    %v1131 = vpack.c.b16 %v1088, %v1087
    %v1132 = vpack.c.b16 %v1090, %v1089
    %v1133 = vpack.c.b16 %v1092, %v1091
    %v1134 = vpack.c.b16 %v1094, %v1093
    %v1135 = vpack.c.b16 %v1096, %v1095
    %v1136 = vpack.c.b16 %v1098, %v1097
    %v1137 = vpack.c.b16 %v1100, %v1099
    %v1138 = vpack.c.b16 %v1102, %v1101
    %v1139 = vpack.c.b16 %v1104, %v1103
    %v1140 = vpack.c.b16 %v1106, %v1105
    %v1141 = vpack.c.b16 %v1108, %v1107
    %v1142 = vpack.c.b16 %v1110, %v1109
    %1175 = vmatprep.subr.bf16.mxu0 0
    %1176 = vmatpush1.bf16.msra.mxu0 %v1111
    %1177 = vmatprep.subr.bf16.mxu0 0
    %1178 = vmatpush1.bf16.msra.mxu0 %v1112
    %1179 = vmatprep.subr.bf16.mxu0 0
    %1180 = vmatpush1.bf16.msra.mxu0 %v1113
    %1181 = vmatprep.subr.bf16.mxu0 0
    %1182 = vmatpush1.bf16.msra.mxu0 %v1114
    %1183 = vmatprep.subr.bf16.mxu0 0
    %1184 = vmatpush1.bf16.msra.mxu0 %v1115
    %1185 = vmatprep.subr.bf16.mxu0 0
    %1186 = vmatpush1.bf16.msra.mxu0 %v1116
    %1187 = vmatprep.subr.bf16.mxu0 0
    %1188 = vmatpush1.bf16.msra.mxu0 %v1117
    %1189 = vmatprep.subr.bf16.mxu0 0
    %1190 = vmatpush1.bf16.msra.mxu0 %v1118
    %1191 = vmatprep.subr.bf16.mxu0 0
    %1192 = vmatpush1.bf16.msra.mxu0 %v1119
    %1193 = vmatprep.subr.bf16.mxu0 0
    %1194 = vmatpush1.bf16.msra.mxu0 %v1120
    %1195 = vmatprep.subr.bf16.mxu0 0
    %1196 = vmatpush1.bf16.msra.mxu0 %v1121
    %1197 = vmatprep.subr.bf16.mxu0 0
    %1198 = vmatpush1.bf16.msra.mxu0 %v1122
    %1199 = vmatprep.subr.bf16.mxu0 0
    %1200 = vmatpush1.bf16.msra.mxu0 %v1123
    %1201 = vmatprep.subr.bf16.mxu0 0
    %1202 = vmatpush1.bf16.msra.mxu0 %v1124
    %1203 = vmatprep.subr.bf16.mxu0 0
    %1204 = vmatpush1.bf16.msra.mxu0 %v1125
    %1205 = vmatprep.subr.bf16.mxu0 0
    %1206 = vmatpush1.bf16.msra.mxu0 %v1126
    %1207 = vmatprep.mubr.bf16.mxu0 %v980
    %1208 = vmatmul.mubr.bf16.gmra.mrb[0].mxu0 %v979
    %v1209 = vpop.f32.mrb[0].mxu0
    %v1210 = vadd.f32 %v978, %v1209
    %v1211 = vpop.f32.mrb[0].mxu0
    %v1212 = vpop.f32.mrb[0].mxu0
    %v1213 = vpop.f32.mrb[0].mxu0
    %1214 = vdwg.mxu0
    %1215 = vmatprep.subr.bf16.mxu0 0
    %1216 = vmatpush1.bf16.msra.mxu0 %v1127
    %1217 = vmatprep.subr.bf16.mxu0 0
    %1218 = vmatpush1.bf16.msra.mxu0 %v1128
    %1219 = vmatprep.subr.bf16.mxu0 0
    %1220 = vmatpush1.bf16.msra.mxu0 %v1129
    %1221 = vmatprep.subr.bf16.mxu0 0
    %1222 = vmatpush1.bf16.msra.mxu0 %v1130
    %1223 = vmatprep.subr.bf16.mxu0 0
    %1224 = vmatpush1.bf16.msra.mxu0 %v1131
    %1225 = vmatprep.subr.bf16.mxu0 0
    %1226 = vmatpush1.bf16.msra.mxu0 %v1132
    %1227 = vmatprep.subr.bf16.mxu0 0
    %1228 = vmatpush1.bf16.msra.mxu0 %v1133
    %1229 = vmatprep.subr.bf16.mxu0 0
    %1230 = vmatpush1.bf16.msra.mxu0 %v1134
    %1231 = vmatprep.subr.bf16.mxu0 0
    %1232 = vmatpush1.bf16.msra.mxu0 %v1135
    %1233 = vmatprep.subr.bf16.mxu0 0
    %1234 = vmatpush1.bf16.msra.mxu0 %v1136
    %1235 = vmatprep.subr.bf16.mxu0 0
    %1236 = vmatpush1.bf16.msra.mxu0 %v1137
    %1237 = vmatprep.subr.bf16.mxu0 0
    %1238 = vmatpush1.bf16.msra.mxu0 %v1138
    %1239 = vmatprep.subr.bf16.mxu0 0
    %1240 = vmatpush1.bf16.msra.mxu0 %v1139
    %1241 = vmatprep.subr.bf16.mxu0 0
    %1242 = vmatpush1.bf16.msra.mxu0 %v1140
    %1243 = vmatprep.subr.bf16.mxu0 0
    %1244 = vmatpush1.bf16.msra.mxu0 %v1141
    %1245 = vmatprep.subr.bf16.mxu0 0
    %1246 = vmatpush1.bf16.msra.mxu0 %v1142
    %1247 = vmatprep.mubr.bf16.mxu0 %v982
    %1248 = vmatmul.mubr.bf16.gmra.mrb[0].mxu0 %v981
    %v1249 = vpop.f32.mrb[0].mxu0
    %v1250 = vadd.f32 %v1210, %v1249
    %v1251 = vpop.f32.mrb[0].mxu0
    %v1252 = vpop.f32.mrb[0].mxu0
    %v1253 = vpop.f32.mrb[0].mxu0
    %1254 = vdwg.mxu0
    %v1255 = vld [vmem:[#allocation2] sm:$0xff]
    %v1256 = vmul.f32 %v1250, 0.5
    %v1257 = vmul.f32 %v1256, 1.442695
    %v1258 = vpow.pop %v1257
    %1260 = vrot.lane.b32.xlu0 %v1258, 120
    %v1261 = vpop.permute.xlu0 %1260
    %v1263 = vmul.f32 %v1255, %v1261
    %v1264 = vadd.f32 %v1263, %v1250
    %v1265 = vld [vmem:[#allocation4 + $0x7e0] sm:$0xff]
    %v1266 = vld [vmem:[#allocation4 + $0x7e8] sm:$0xff]
    %v1267 = vld [vmem:[#allocation4 + $0x7f0] sm:$0xff]
    %v1268 = vld [vmem:[#allocation4 + $0x7f8] sm:$0xff]
    %s1269 = scalar_lea.vmem [#allocation6], 6
    %v1270 = vld [vmem:[%s1269] ss:$8 sm:$0xf]
    %vm1271 = vcmask 64512
    %v1272 = vsel %vm1271, %v1264, 0.0
    %v1273 = vpack.c.bf16 %v1272, %v1272
    %v1275 = vlaneseq
    %v1276 = vshrl.u32 %v1275, 7
    %v1277 = vsub.s32 0, %v1276
    %v1278 = vrot.slane %v1270, %v1277
    %v1279 = vlaneseq
    %v1280 = vshrl.u32 %v1279, 7
    %v1281 = vsub.s32 1, %v1280
    %v1282 = vrot.slane %v1270, %v1281
    %v1283 = vlaneseq
    %v1284 = vshrl.u32 %v1283, 7
    %v1285 = vsub.s32 2, %v1284
    %v1286 = vrot.slane %v1270, %v1285
    %v1287 = vlaneseq
    %v1288 = vshrl.u32 %v1287, 7
    %v1289 = vsub.s32 3, %v1288
    %v1290 = vrot.slane %v1270, %v1289
    %v1299 = vunpack.c.l.b16 %v1265
    %v1300 = vunpack.c.h.b16 %v1265
    %v1301 = vunpack.c.l.b16 %v1266
    %v1302 = vunpack.c.h.b16 %v1266
    %v1303 = vunpack.c.l.b16 %v1267
    %v1304 = vunpack.c.h.b16 %v1267
    %v1305 = vunpack.c.l.b16 %v1268
    %v1306 = vunpack.c.h.b16 %v1268
    %v1307 = vpack.c.b16 %v1303, %v1299
    %v1308 = vpack.c.b16 %v1304, %v1300
    %v1309 = vpack.c.b16 %v1305, %v1301
    %v1310 = vpack.c.b16 %v1306, %v1302
    %v1316 = vsel %vm70, %v1273, 0
    %1318 = vmatprep.subr.bf16.mxu0 %v1308
    %1319 = vmatpush1.bf16.msra.mxu0 %v1307
    %1320 = vmatprep.subr.bf16.mxu0 0
    %1321 = vmatpush1.bf16.msra.mxu0 0
    %1322 = vmatprep.subr.bf16.mxu0 0
    %1323 = vmatpush1.bf16.msra.mxu0 0
    %1324 = vmatprep.subr.bf16.mxu0 0
    %1325 = vmatpush1.bf16.msra.mxu0 0
    %1326 = vmatprep.subr.bf16.mxu0 0
    %1327 = vmatpush1.bf16.msra.mxu0 0
    %1328 = vmatprep.subr.bf16.mxu0 0
    %1329 = vmatpush1.bf16.msra.mxu0 0
    %1330 = vmatprep.subr.bf16.mxu0 0
    %1331 = vmatpush1.bf16.msra.mxu0 0
    %1332 = vmatprep.subr.bf16.mxu0 0
    %1333 = vmatpush1.bf16.msra.mxu0 0
    %1334 = vmatprep.subr.bf16.mxu0 0
    %1335 = vmatpush1.bf16.msra.mxu0 0
    %1336 = vmatprep.subr.bf16.mxu0 0
    %1337 = vmatpush1.bf16.msra.mxu0 0
    %1338 = vmatprep.subr.bf16.mxu0 0
    %1339 = vmatpush1.bf16.msra.mxu0 0
    %1340 = vmatprep.subr.bf16.mxu0 0
    %1341 = vmatpush1.bf16.msra.mxu0 0
    %1342 = vmatprep.subr.bf16.mxu0 0
    %1343 = vmatpush1.bf16.msra.mxu0 0
    %1344 = vmatprep.subr.bf16.mxu0 0
    %1345 = vmatpush1.bf16.msra.mxu0 0
    %1346 = vmatprep.subr.bf16.mxu0 0
    %1347 = vmatpush1.bf16.msra.mxu0 0
    %1348 = vmatprep.subr.bf16.mxu0 0
    %1349 = vmatpush1.bf16.msra.mxu0 0
    %1350 = vmatprep.mubr.bf16.mxu0 0
    %1351 = vmatmul.mubr.bf16.gmra.mrb[0].mxu0 %v1316
    %v1352 = vpop.f32.mrb[0].mxu0
    %v1353 = vadd.f32 %v1278, %v1352
    %v1354 = vpop.f32.mrb[0].mxu0
    %v1355 = vadd.f32 %v1282, %v1354
    %v1356 = vpop.f32.mrb[0].mxu0
    %v1357 = vpop.f32.mrb[0].mxu0
    %1358 = vdwg.mxu0
    %1359 = vmatprep.subr.bf16.mxu0 %v1310
    %1360 = vmatpush1.bf16.msra.mxu0 %v1309
    %1361 = vmatprep.subr.bf16.mxu0 0
    %1362 = vmatpush1.bf16.msra.mxu0 0
    %1363 = vmatprep.subr.bf16.mxu0 0
    %1364 = vmatpush1.bf16.msra.mxu0 0
    %1365 = vmatprep.subr.bf16.mxu0 0
    %1366 = vmatpush1.bf16.msra.mxu0 0
    %1367 = vmatprep.subr.bf16.mxu0 0
    %1368 = vmatpush1.bf16.msra.mxu0 0
    %1369 = vmatprep.subr.bf16.mxu0 0
    %1370 = vmatpush1.bf16.msra.mxu0 0
    %1371 = vmatprep.subr.bf16.mxu0 0
    %1372 = vmatpush1.bf16.msra.mxu0 0
    %1373 = vmatprep.subr.bf16.mxu0 0
    %1374 = vmatpush1.bf16.msra.mxu0 0
    %1375 = vmatprep.subr.bf16.mxu0 0
    %1376 = vmatpush1.bf16.msra.mxu0 0
    %1377 = vmatprep.subr.bf16.mxu0 0
    %1378 = vmatpush1.bf16.msra.mxu0 0
    %1379 = vmatprep.subr.bf16.mxu0 0
    %1380 = vmatpush1.bf16.msra.mxu0 0
    %1381 = vmatprep.subr.bf16.mxu0 0
    %1382 = vmatpush1.bf16.msra.mxu0 0
    %1383 = vmatprep.subr.bf16.mxu0 0
    %1384 = vmatpush1.bf16.msra.mxu0 0
    %1385 = vmatprep.subr.bf16.mxu0 0
    %1386 = vmatpush1.bf16.msra.mxu0 0
    %1387 = vmatprep.subr.bf16.mxu0 0
    %1388 = vmatpush1.bf16.msra.mxu0 0
    %1389 = vmatprep.subr.bf16.mxu0 0
    %1390 = vmatpush1.bf16.msra.mxu0 0
    %1391 = vmatprep.mubr.bf16.mxu0 0
    %1392 = vmatmul.mubr.bf16.gmra.mrb[0].mxu0 %v1316
    %v1393 = vpop.f32.mrb[0].mxu0
    %v1394 = vadd.f32 %v1286, %v1393
    %v1395 = vpop.f32.mrb[0].mxu0
    %v1396 = vadd.f32 %v1290, %v1395
    %v1397 = vpop.f32.mrb[0].mxu0
    %v1398 = vpop.f32.mrb[0].mxu0
    %1399 = vdwg.mxu0
    %v1400 = vld [vmem:[#allocation4 + $0x800] sm:$0xff]
    %v1401 = vld [vmem:[#allocation4 + $0x810] sm:$0xff]
    %v1402 = vld [vmem:[#allocation4 + $0x820] sm:$0xff]
    %v1403 = vld [vmem:[#allocation4 + $0x830] sm:$0xff]
    %v1404 = vld [vmem:[#allocation4 + $0x840] sm:$0xff]
    %v1405 = vld [vmem:[#allocation4 + $0x850] sm:$0xff]
    %v1406 = vld [vmem:[#allocation4 + $0x860] sm:$0xff]
    %v1407 = vld [vmem:[#allocation4 + $0x870] sm:$0xff]
    %v1408 = vld [vmem:[#allocation4 + $0x880] sm:$0xff]
    %v1409 = vld [vmem:[#allocation4 + $0x890] sm:$0xff]
    %v1410 = vld [vmem:[#allocation4 + $0x8a0] sm:$0xff]
    %v1411 = vld [vmem:[#allocation4 + $0x8b0] sm:$0xff]
    %v1412 = vld [vmem:[#allocation4 + $0x8c0] sm:$0xff]
    %v1413 = vld [vmem:[#allocation4 + $0x8d0] sm:$0xff]
    %v1414 = vld [vmem:[#allocation4 + $0x8e0] sm:$0xff]
    %v1415 = vld [vmem:[#allocation4 + $0x8f0] sm:$0xff]
    %v1416 = vld [vmem:[#allocation4 + $0x900] sm:$0xff]
    %v1417 = vld [vmem:[#allocation4 + $0x910] sm:$0xff]
    %v1418 = vld [vmem:[#allocation4 + $0x920] sm:$0xff]
    %v1419 = vld [vmem:[#allocation4 + $0x930] sm:$0xff]
    %v1420 = vld [vmem:[#allocation4 + $0x940] sm:$0xff]
    %v1421 = vld [vmem:[#allocation4 + $0x950] sm:$0xff]
    %v1422 = vld [vmem:[#allocation4 + $0x960] sm:$0xff]
    %v1423 = vld [vmem:[#allocation4 + $0x970] sm:$0xff]
    %v1424 = vld [vmem:[#allocation4 + $0x980] sm:$0xff]
    %v1425 = vld [vmem:[#allocation4 + $0x990] sm:$0xff]
    %v1426 = vld [vmem:[#allocation4 + $0x9a0] sm:$0xff]
    %v1427 = vld [vmem:[#allocation4 + $0x9b0] sm:$0xff]
    %v1428 = vld [vmem:[#allocation4 + $0x9c0] sm:$0xff]
    %v1429 = vld [vmem:[#allocation4 + $0x9d0] sm:$0xff]
    %v1430 = vld [vmem:[#allocation4 + $0x9e0] sm:$0xff]
    %v1431 = vld [vmem:[#allocation4 + $0x9f0] sm:$0xff]
    %v1432 = vld [vmem:[#allocation4 + $0xa00] sm:$0xff]
    %v1433 = vld [vmem:[#allocation4 + $0xa10] sm:$0xff]
    %v1434 = vld [vmem:[#allocation4 + $0xa20] sm:$0xff]
    %v1435 = vld [vmem:[#allocation4 + $0xa30] sm:$0xff]
    %v1436 = vld [vmem:[#allocation4 + $0xa40] sm:$0xff]
    %v1437 = vld [vmem:[#allocation4 + $0xa50] sm:$0xff]
    %v1438 = vld [vmem:[#allocation4 + $0xa60] sm:$0xff]
    %v1439 = vld [vmem:[#allocation4 + $0xa70] sm:$0xff]
    %v1440 = vld [vmem:[#allocation4 + $0xa80] sm:$0xff]
    %v1441 = vld [vmem:[#allocation4 + $0xa90] sm:$0xff]
    %v1442 = vld [vmem:[#allocation4 + $0xaa0] sm:$0xff]
    %v1443 = vld [vmem:[#allocation4 + $0xab0] sm:$0xff]
    %v1444 = vld [vmem:[#allocation4 + $0xac0] sm:$0xff]
    %v1445 = vld [vmem:[#allocation4 + $0xad0] sm:$0xff]
    %v1446 = vld [vmem:[#allocation4 + $0xae0] sm:$0xff]
    %v1447 = vld [vmem:[#allocation4 + $0xaf0] sm:$0xff]
    %v1448 = vld [vmem:[#allocation4 + $0xb00] sm:$0xff]
    %v1449 = vld [vmem:[#allocation4 + $0xb10] sm:$0xff]
    %v1450 = vld [vmem:[#allocation4 + $0xb20] sm:$0xff]
    %v1451 = vld [vmem:[#allocation4 + $0xb30] sm:$0xff]
    %v1452 = vld [vmem:[#allocation4 + $0xb40] sm:$0xff]
    %v1453 = vld [vmem:[#allocation4 + $0xb50] sm:$0xff]
    %v1454 = vld [vmem:[#allocation4 + $0xb60] sm:$0xff]
    %v1455 = vld [vmem:[#allocation4 + $0xb70] sm:$0xff]
    %v1456 = vld [vmem:[#allocation4 + $0xb80] sm:$0xff]
    %v1457 = vld [vmem:[#allocation4 + $0xb90] sm:$0xff]
    %v1458 = vld [vmem:[#allocation4 + $0xba0] sm:$0xff]
    %v1459 = vld [vmem:[#allocation4 + $0xbb0] sm:$0xff]
    %v1460 = vld [vmem:[#allocation4 + $0xbc0] sm:$0xff]
    %v1461 = vld [vmem:[#allocation4 + $0xbd0] sm:$0xff]
    %v1462 = vld [vmem:[#allocation4 + $0xbe0] sm:$0xff]
    %v1463 = vld [vmem:[#allocation4 + $0xbf0] sm:$0xff]
    %s1464 = scalar_lea.vmem [#allocation6], 7
    %v1465 = vld [vmem:[%s1464] ss:$8 sm:$0x3]
    %v1466 = vpack.c.bf16 %v1353, %v1353
    %v1467 = vpack.c.bf16 %v1355, %v1355
    %v1468 = vpack.c.bf16 %v1394, %v1394
    %v1469 = vpack.c.bf16 %v1396, %v1396
    %v1471 = vlaneseq
    %v1472 = vshrl.u32 %v1471, 7
    %v1473 = vsub.s32 0, %v1472
    %v1474 = vrot.slane %v1465, %v1473
    %v1475 = vlaneseq
    %v1476 = vshrl.u32 %v1475, 7
    %v1477 = vsub.s32 1, %v1476
    %v1478 = vrot.slane %v1465, %v1477
    %v1545 = vunpack.c.l.b16 %v1400
    %v1546 = vunpack.c.h.b16 %v1400
    %v1547 = vunpack.c.l.b16 %v1401
    %v1548 = vunpack.c.h.b16 %v1401
    %v1549 = vunpack.c.l.b16 %v1402
    %v1550 = vunpack.c.h.b16 %v1402
    %v1551 = vunpack.c.l.b16 %v1403
    %v1552 = vunpack.c.h.b16 %v1403
    %v1553 = vunpack.c.l.b16 %v1404
    %v1554 = vunpack.c.h.b16 %v1404
    %v1555 = vunpack.c.l.b16 %v1405
    %v1556 = vunpack.c.h.b16 %v1405
    %v1557 = vunpack.c.l.b16 %v1406
    %v1558 = vunpack.c.h.b16 %v1406
    %v1559 = vunpack.c.l.b16 %v1407
    %v1560 = vunpack.c.h.b16 %v1407
    %v1561 = vunpack.c.l.b16 %v1408
    %v1562 = vunpack.c.h.b16 %v1408
    %v1563 = vunpack.c.l.b16 %v1409
    %v1564 = vunpack.c.h.b16 %v1409
    %v1565 = vunpack.c.l.b16 %v1410
    %v1566 = vunpack.c.h.b16 %v1410
    %v1567 = vunpack.c.l.b16 %v1411
    %v1568 = vunpack.c.h.b16 %v1411
    %v1569 = vunpack.c.l.b16 %v1412
    %v1570 = vunpack.c.h.b16 %v1412
    %v1571 = vunpack.c.l.b16 %v1413
    %v1572 = vunpack.c.h.b16 %v1413
    %v1573 = vunpack.c.l.b16 %v1414
    %v1574 = vunpack.c.h.b16 %v1414
    %v1575 = vunpack.c.l.b16 %v1415
    %v1576 = vunpack.c.h.b16 %v1415
    %v1577 = vunpack.c.l.b16 %v1416
    %v1578 = vunpack.c.h.b16 %v1416
    %v1579 = vunpack.c.l.b16 %v1417
    %v1580 = vunpack.c.h.b16 %v1417
    %v1581 = vunpack.c.l.b16 %v1418
    %v1582 = vunpack.c.h.b16 %v1418
    %v1583 = vunpack.c.l.b16 %v1419
    %v1584 = vunpack.c.h.b16 %v1419
    %v1585 = vunpack.c.l.b16 %v1420
    %v1586 = vunpack.c.h.b16 %v1420
    %v1587 = vunpack.c.l.b16 %v1421
    %v1588 = vunpack.c.h.b16 %v1421
    %v1589 = vunpack.c.l.b16 %v1422
    %v1590 = vunpack.c.h.b16 %v1422
    %v1591 = vunpack.c.l.b16 %v1423
    %v1592 = vunpack.c.h.b16 %v1423
    %v1593 = vunpack.c.l.b16 %v1424
    %v1594 = vunpack.c.h.b16 %v1424
    %v1595 = vunpack.c.l.b16 %v1425
    %v1596 = vunpack.c.h.b16 %v1425
    %v1597 = vunpack.c.l.b16 %v1426
    %v1598 = vunpack.c.h.b16 %v1426
    %v1599 = vunpack.c.l.b16 %v1427
    %v1600 = vunpack.c.h.b16 %v1427
    %v1601 = vunpack.c.l.b16 %v1428
    %v1602 = vunpack.c.h.b16 %v1428
    %v1603 = vunpack.c.l.b16 %v1429
    %v1604 = vunpack.c.h.b16 %v1429
    %v1605 = vunpack.c.l.b16 %v1430
    %v1606 = vunpack.c.h.b16 %v1430
    %v1607 = vunpack.c.l.b16 %v1431
    %v1608 = vunpack.c.h.b16 %v1431
    %v1609 = vunpack.c.l.b16 %v1432
    %v1610 = vunpack.c.h.b16 %v1432
    %v1611 = vunpack.c.l.b16 %v1433
    %v1612 = vunpack.c.h.b16 %v1433
    %v1613 = vunpack.c.l.b16 %v1434
    %v1614 = vunpack.c.h.b16 %v1434
    %v1615 = vunpack.c.l.b16 %v1435
    %v1616 = vunpack.c.h.b16 %v1435
    %v1617 = vunpack.c.l.b16 %v1436
    %v1618 = vunpack.c.h.b16 %v1436
    %v1619 = vunpack.c.l.b16 %v1437
    %v1620 = vunpack.c.h.b16 %v1437
    %v1621 = vunpack.c.l.b16 %v1438
    %v1622 = vunpack.c.h.b16 %v1438
    %v1623 = vunpack.c.l.b16 %v1439
    %v1624 = vunpack.c.h.b16 %v1439
    %v1625 = vunpack.c.l.b16 %v1440
    %v1626 = vunpack.c.h.b16 %v1440
    %v1627 = vunpack.c.l.b16 %v1441
    %v1628 = vunpack.c.h.b16 %v1441
    %v1629 = vunpack.c.l.b16 %v1442
    %v1630 = vunpack.c.h.b16 %v1442
    %v1631 = vunpack.c.l.b16 %v1443
    %v1632 = vunpack.c.h.b16 %v1443
    %v1633 = vunpack.c.l.b16 %v1444
    %v1634 = vunpack.c.h.b16 %v1444
    %v1635 = vunpack.c.l.b16 %v1445
    %v1636 = vunpack.c.h.b16 %v1445
    %v1637 = vunpack.c.l.b16 %v1446
    %v1638 = vunpack.c.h.b16 %v1446
    %v1639 = vunpack.c.l.b16 %v1447
    %v1640 = vunpack.c.h.b16 %v1447
    %v1641 = vunpack.c.l.b16 %v1448
    %v1642 = vunpack.c.h.b16 %v1448
    %v1643 = vunpack.c.l.b16 %v1449
    %v1644 = vunpack.c.h.b16 %v1449
    %v1645 = vunpack.c.l.b16 %v1450
    %v1646 = vunpack.c.h.b16 %v1450
    %v1647 = vunpack.c.l.b16 %v1451
    %v1648 = vunpack.c.h.b16 %v1451
    %v1649 = vunpack.c.l.b16 %v1452
    %v1650 = vunpack.c.h.b16 %v1452
    %v1651 = vunpack.c.l.b16 %v1453
    %v1652 = vunpack.c.h.b16 %v1453
    %v1653 = vunpack.c.l.b16 %v1454
    %v1654 = vunpack.c.h.b16 %v1454
    %v1655 = vunpack.c.l.b16 %v1455
    %v1656 = vunpack.c.h.b16 %v1455
    %v1657 = vunpack.c.l.b16 %v1456
    %v1658 = vunpack.c.h.b16 %v1456
    %v1659 = vunpack.c.l.b16 %v1457
    %v1660 = vunpack.c.h.b16 %v1457
    %v1661 = vunpack.c.l.b16 %v1458
    %v1662 = vunpack.c.h.b16 %v1458
    %v1663 = vunpack.c.l.b16 %v1459
    %v1664 = vunpack.c.h.b16 %v1459
    %v1665 = vunpack.c.l.b16 %v1460
    %v1666 = vunpack.c.h.b16 %v1460
    %v1667 = vunpack.c.l.b16 %v1461
    %v1668 = vunpack.c.h.b16 %v1461
    %v1669 = vunpack.c.l.b16 %v1462
    %v1670 = vunpack.c.h.b16 %v1462
    %v1671 = vunpack.c.l.b16 %v1463
    %v1672 = vunpack.c.h.b16 %v1463
    %v1673 = vpack.c.b16 %v1547, %v1545
    %v1674 = vpack.c.b16 %v1548, %v1546
    %v1675 = vpack.c.b16 %v1551, %v1549
    %v1676 = vpack.c.b16 %v1552, %v1550
    %v1677 = vpack.c.b16 %v1555, %v1553
    %v1678 = vpack.c.b16 %v1556, %v1554
    %v1679 = vpack.c.b16 %v1559, %v1557
    %v1680 = vpack.c.b16 %v1560, %v1558
    %v1681 = vpack.c.b16 %v1563, %v1561
    %v1682 = vpack.c.b16 %v1564, %v1562
    %v1683 = vpack.c.b16 %v1567, %v1565
    %v1684 = vpack.c.b16 %v1568, %v1566
    %v1685 = vpack.c.b16 %v1571, %v1569
    %v1686 = vpack.c.b16 %v1572, %v1570
    %v1687 = vpack.c.b16 %v1575, %v1573
    %v1688 = vpack.c.b16 %v1576, %v1574
    %v1689 = vpack.c.b16 %v1579, %v1577
    %v1690 = vpack.c.b16 %v1580, %v1578
    %v1691 = vpack.c.b16 %v1583, %v1581
    %v1692 = vpack.c.b16 %v1584, %v1582
    %v1693 = vpack.c.b16 %v1587, %v1585
    %v1694 = vpack.c.b16 %v1588, %v1586
    %v1695 = vpack.c.b16 %v1591, %v1589
    %v1696 = vpack.c.b16 %v1592, %v1590
    %v1697 = vpack.c.b16 %v1595, %v1593
    %v1698 = vpack.c.b16 %v1596, %v1594
    %v1699 = vpack.c.b16 %v1599, %v1597
    %v1700 = vpack.c.b16 %v1600, %v1598
    %v1701 = vpack.c.b16 %v1603, %v1601
    %v1702 = vpack.c.b16 %v1604, %v1602
    %v1703 = vpack.c.b16 %v1607, %v1605
    %v1704 = vpack.c.b16 %v1608, %v1606
    %v1705 = vpack.c.b16 %v1611, %v1609
    %v1706 = vpack.c.b16 %v1612, %v1610
    %v1707 = vpack.c.b16 %v1615, %v1613
    %v1708 = vpack.c.b16 %v1616, %v1614
    %v1709 = vpack.c.b16 %v1619, %v1617
    %v1710 = vpack.c.b16 %v1620, %v1618
    %v1711 = vpack.c.b16 %v1623, %v1621
    %v1712 = vpack.c.b16 %v1624, %v1622
    %v1713 = vpack.c.b16 %v1627, %v1625
    %v1714 = vpack.c.b16 %v1628, %v1626
    %v1715 = vpack.c.b16 %v1631, %v1629
    %v1716 = vpack.c.b16 %v1632, %v1630
    %v1717 = vpack.c.b16 %v1635, %v1633
    %v1718 = vpack.c.b16 %v1636, %v1634
    %v1719 = vpack.c.b16 %v1639, %v1637
    %v1720 = vpack.c.b16 %v1640, %v1638
    %v1721 = vpack.c.b16 %v1643, %v1641
    %v1722 = vpack.c.b16 %v1644, %v1642
    %v1723 = vpack.c.b16 %v1647, %v1645
    %v1724 = vpack.c.b16 %v1648, %v1646
    %v1725 = vpack.c.b16 %v1651, %v1649
    %v1726 = vpack.c.b16 %v1652, %v1650
    %v1727 = vpack.c.b16 %v1655, %v1653
    %v1728 = vpack.c.b16 %v1656, %v1654
    %v1729 = vpack.c.b16 %v1659, %v1657
    %v1730 = vpack.c.b16 %v1660, %v1658
    %v1731 = vpack.c.b16 %v1663, %v1661
    %v1732 = vpack.c.b16 %v1664, %v1662
    %v1733 = vpack.c.b16 %v1667, %v1665
    %v1734 = vpack.c.b16 %v1668, %v1666
    %v1735 = vpack.c.b16 %v1671, %v1669
    %v1736 = vpack.c.b16 %v1672, %v1670
    %1801 = vmatprep.subr.bf16.mxu0 %v1674
    %1802 = vmatpush1.bf16.msra.mxu0 %v1673
    %1803 = vmatprep.subr.bf16.mxu0 %v1676
    %1804 = vmatpush1.bf16.msra.mxu0 %v1675
    %1805 = vmatprep.subr.bf16.mxu0 %v1678
    %1806 = vmatpush1.bf16.msra.mxu0 %v1677
    %1807 = vmatprep.subr.bf16.mxu0 %v1680
    %1808 = vmatpush1.bf16.msra.mxu0 %v1679
    %1809 = vmatprep.subr.bf16.mxu0 %v1682
    %1810 = vmatpush1.bf16.msra.mxu0 %v1681
    %1811 = vmatprep.subr.bf16.mxu0 %v1684
    %1812 = vmatpush1.bf16.msra.mxu0 %v1683
    %1813 = vmatprep.subr.bf16.mxu0 %v1686
    %1814 = vmatpush1.bf16.msra.mxu0 %v1685
    %1815 = vmatprep.subr.bf16.mxu0 %v1688
    %1816 = vmatpush1.bf16.msra.mxu0 %v1687
    %1817 = vmatprep.subr.bf16.mxu0 %v1690
    %1818 = vmatpush1.bf16.msra.mxu0 %v1689
    %1819 = vmatprep.subr.bf16.mxu0 %v1692
    %1820 = vmatpush1.bf16.msra.mxu0 %v1691
    %1821 = vmatprep.subr.bf16.mxu0 %v1694
    %1822 = vmatpush1.bf16.msra.mxu0 %v1693
    %1823 = vmatprep.subr.bf16.mxu0 %v1696
    %1824 = vmatpush1.bf16.msra.mxu0 %v1695
    %1825 = vmatprep.subr.bf16.mxu0 %v1698
    %1826 = vmatpush1.bf16.msra.mxu0 %v1697
    %1827 = vmatprep.subr.bf16.mxu0 %v1700
    %1828 = vmatpush1.bf16.msra.mxu0 %v1699
    %1829 = vmatprep.subr.bf16.mxu0 %v1702
    %1830 = vmatpush1.bf16.msra.mxu0 %v1701
    %1831 = vmatprep.subr.bf16.mxu0 %v1704
    %1832 = vmatpush1.bf16.msra.mxu0 %v1703
    %1833 = vmatprep.mubr.bf16.mxu0 %v1467
    %1834 = vmatmul.mubr.bf16.gmra.mrb[0].mxu0 %v1466
    %v1835 = vpop.f32.mrb[0].mxu0
    %v1836 = vadd.f32 %v1474, %v1835
    %v1837 = vpop.f32.mrb[0].mxu0
    %v1838 = vadd.f32 %v1478, %v1837
    %v1839 = vpop.f32.mrb[0].mxu0
    %v1840 = vpop.f32.mrb[0].mxu0
    %1841 = vdwg.mxu0
    %1842 = vmatprep.subr.bf16.mxu0 %v1706
    %1843 = vmatpush1.bf16.msra.mxu0 %v1705
    %1844 = vmatprep.subr.bf16.mxu0 %v1708
    %1845 = vmatpush1.bf16.msra.mxu0 %v1707
    %1846 = vmatprep.subr.bf16.mxu0 %v1710
    %1847 = vmatpush1.bf16.msra.mxu0 %v1709
    %1848 = vmatprep.subr.bf16.mxu0 %v1712
    %1849 = vmatpush1.bf16.msra.mxu0 %v1711
    %1850 = vmatprep.subr.bf16.mxu0 %v1714
    %1851 = vmatpush1.bf16.msra.mxu0 %v1713
    %1852 = vmatprep.subr.bf16.mxu0 %v1716
    %1853 = vmatpush1.bf16.msra.mxu0 %v1715
    %1854 = vmatprep.subr.bf16.mxu0 %v1718
    %1855 = vmatpush1.bf16.msra.mxu0 %v1717
    %1856 = vmatprep.subr.bf16.mxu0 %v1720
    %1857 = vmatpush1.bf16.msra.mxu0 %v1719
    %1858 = vmatprep.subr.bf16.mxu0 %v1722
    %1859 = vmatpush1.bf16.msra.mxu0 %v1721
    %1860 = vmatprep.subr.bf16.mxu0 %v1724
    %1861 = vmatpush1.bf16.msra.mxu0 %v1723
    %1862 = vmatprep.subr.bf16.mxu0 %v1726
    %1863 = vmatpush1.bf16.msra.mxu0 %v1725
    %1864 = vmatprep.subr.bf16.mxu0 %v1728
    %1865 = vmatpush1.bf16.msra.mxu0 %v1727
    %1866 = vmatprep.subr.bf16.mxu0 %v1730
    %1867 = vmatpush1.bf16.msra.mxu0 %v1729
    %1868 = vmatprep.subr.bf16.mxu0 %v1732
    %1869 = vmatpush1.bf16.msra.mxu0 %v1731
    %1870 = vmatprep.subr.bf16.mxu0 %v1734
    %1871 = vmatpush1.bf16.msra.mxu0 %v1733
    %1872 = vmatprep.subr.bf16.mxu0 %v1736
    %1873 = vmatpush1.bf16.msra.mxu0 %v1735
    %1874 = vmatprep.mubr.bf16.mxu0 %v1469
    %1875 = vmatmul.mubr.bf16.gmra.mrb[0].mxu0 %v1468
    %v1876 = vpop.f32.mrb[0].mxu0
    %v1877 = vadd.f32 %v1836, %v1876
    %v1878 = vpop.f32.mrb[0].mxu0
    %v1879 = vadd.f32 %v1838, %v1878
    %v1880 = vpop.f32.mrb[0].mxu0
    %v1881 = vpop.f32.mrb[0].mxu0
    %1882 = vdwg.mxu0
    %v1883 = vmul.f32 %v1877, 0.01
    %v1884 = vmul.f32 %v1879, 0.01
    %v1885 = vmax.f32 %v1877, %v1883
    %v1886 = vmax.f32 %v1879, %v1884
    %v1887 = vld [vmem:[#allocation4 + $0xc00] sm:$0xf]
    %v1888 = vld [vmem:[#allocation4 + $0xc10] sm:$0xf]
    %v1889 = vld [vmem:[#allocation4 + $0xc20] sm:$0xf]
    %v1890 = vld [vmem:[#allocation4 + $0xc30] sm:$0xf]
    %v1891 = vld [vmem:[#allocation4 + $0xc40] sm:$0xf]
    %v1892 = vld [vmem:[#allocation4 + $0xc50] sm:$0xf]
    %v1893 = vld [vmem:[#allocation4 + $0xc60] sm:$0xf]
    %v1894 = vld [vmem:[#allocation4 + $0xc70] sm:$0xf]
    %v1895 = vld [vmem:[#allocation4 + $0xc80] sm:$0xf]
    %v1896 = vld [vmem:[#allocation4 + $0xc90] sm:$0xf]
    %v1897 = vld [vmem:[#allocation4 + $0xca0] sm:$0xf]
    %v1898 = vld [vmem:[#allocation4 + $0xcb0] sm:$0xf]
    %v1899 = vld [vmem:[#allocation4 + $0xcc0] sm:$0xf]
    %v1900 = vld [vmem:[#allocation4 + $0xcd0] sm:$0xf]
    %v1901 = vld [vmem:[#allocation4 + $0xce0] sm:$0xf]
    %v1902 = vld [vmem:[#allocation4 + $0xcf0] sm:$0xf]
    %v1903 = vld [vmem:[#allocation4 + $0xd00] sm:$0xf]
    %v1904 = vld [vmem:[#allocation4 + $0xd10] sm:$0xf]
    %v1905 = vld [vmem:[#allocation4 + $0xd20] sm:$0xf]
    %v1906 = vld [vmem:[#allocation4 + $0xd30] sm:$0xf]
    %v1907 = vld [vmem:[#allocation4 + $0xd40] sm:$0xf]
    %v1908 = vld [vmem:[#allocation4 + $0xd50] sm:$0xf]
    %v1909 = vld [vmem:[#allocation4 + $0xd60] sm:$0xf]
    %v1910 = vld [vmem:[#allocation4 + $0xd70] sm:$0xf]
    %v1911 = vld [vmem:[#allocation4 + $0xd80] sm:$0xf]
    %v1912 = vld [vmem:[#allocation4 + $0xd90] sm:$0xf]
    %v1913 = vld [vmem:[#allocation4 + $0xda0] sm:$0xf]
    %v1914 = vld [vmem:[#allocation4 + $0xdb0] sm:$0xf]
    %v1915 = vld [vmem:[#allocation4 + $0xdc0] sm:$0xf]
    %v1916 = vld [vmem:[#allocation4 + $0xdd0] sm:$0xf]
    %v1917 = vld [vmem:[#allocation4 + $0xde0] sm:$0xf]
    %v1918 = vld [vmem:[#allocation4 + $0xdf0] sm:$0xf]
    %v1919 = vld [vmem:[#allocation6 + $0x20] ss:$0 sm:$0xff]
    %v1920 = vpack.c.bf16 %v1885, %v1885
    %v1921 = vpack.c.bf16 %v1886, %v1886
    %v1954 = vunpack.c.l.b16 %v1887
    %v1955 = vunpack.c.l.b16 %v1888
    %v1956 = vunpack.c.l.b16 %v1889
    %v1957 = vunpack.c.l.b16 %v1890
    %v1958 = vunpack.c.l.b16 %v1891
    %v1959 = vunpack.c.l.b16 %v1892
    %v1960 = vunpack.c.l.b16 %v1893
    %v1961 = vunpack.c.l.b16 %v1894
    %v1962 = vunpack.c.l.b16 %v1895
    %v1963 = vunpack.c.l.b16 %v1896
    %v1964 = vunpack.c.l.b16 %v1897
    %v1965 = vunpack.c.l.b16 %v1898
    %v1966 = vunpack.c.l.b16 %v1899
    %v1967 = vunpack.c.l.b16 %v1900
    %v1968 = vunpack.c.l.b16 %v1901
    %v1969 = vunpack.c.l.b16 %v1902
    %v1970 = vunpack.c.l.b16 %v1903
    %v1971 = vunpack.c.l.b16 %v1904
    %v1972 = vunpack.c.l.b16 %v1905
    %v1973 = vunpack.c.l.b16 %v1906
    %v1974 = vunpack.c.l.b16 %v1907
    %v1975 = vunpack.c.l.b16 %v1908
    %v1976 = vunpack.c.l.b16 %v1909
    %v1977 = vunpack.c.l.b16 %v1910
    %v1978 = vunpack.c.l.b16 %v1911
    %v1979 = vunpack.c.l.b16 %v1912
    %v1980 = vunpack.c.l.b16 %v1913
    %v1981 = vunpack.c.l.b16 %v1914
    %v1982 = vunpack.c.l.b16 %v1915
    %v1983 = vunpack.c.l.b16 %v1916
    %v1984 = vunpack.c.l.b16 %v1917
    %v1985 = vunpack.c.l.b16 %v1918
    %v1986 = vpack.c.b16 %v1955, %v1954
    %v1987 = vpack.c.b16 %v1957, %v1956
    %v1988 = vpack.c.b16 %v1959, %v1958
    %v1989 = vpack.c.b16 %v1961, %v1960
    %v1990 = vpack.c.b16 %v1963, %v1962
    %v1991 = vpack.c.b16 %v1965, %v1964
    %v1992 = vpack.c.b16 %v1967, %v1966
    %v1993 = vpack.c.b16 %v1969, %v1968
    %v1994 = vpack.c.b16 %v1971, %v1970
    %v1995 = vpack.c.b16 %v1973, %v1972
    %v1996 = vpack.c.b16 %v1975, %v1974
    %v1997 = vpack.c.b16 %v1977, %v1976
    %v1998 = vpack.c.b16 %v1979, %v1978
    %v1999 = vpack.c.b16 %v1981, %v1980
    %v2000 = vpack.c.b16 %v1983, %v1982
    %v2001 = vpack.c.b16 %v1985, %v1984
    %2018 = vmatprep.subr.bf16.mxu0 0
    %2019 = vmatpush1.bf16.msra.mxu0 %v1986
    %2020 = vmatprep.subr.bf16.mxu0 0
    %2021 = vmatpush1.bf16.msra.mxu0 %v1987
    %2022 = vmatprep.subr.bf16.mxu0 0
    %2023 = vmatpush1.bf16.msra.mxu0 %v1988
    %2024 = vmatprep.subr.bf16.mxu0 0
    %2025 = vmatpush1.bf16.msra.mxu0 %v1989
    %2026 = vmatprep.subr.bf16.mxu0 0
    %2027 = vmatpush1.bf16.msra.mxu0 %v1990
    %2028 = vmatprep.subr.bf16.mxu0 0
    %2029 = vmatpush1.bf16.msra.mxu0 %v1991
    %2030 = vmatprep.subr.bf16.mxu0 0
    %2031 = vmatpush1.bf16.msra.mxu0 %v1992
    %2032 = vmatprep.subr.bf16.mxu0 0
    %2033 = vmatpush1.bf16.msra.mxu0 %v1993
    %2034 = vmatprep.subr.bf16.mxu0 0
    %2035 = vmatpush1.bf16.msra.mxu0 %v1994
    %2036 = vmatprep.subr.bf16.mxu0 0
    %2037 = vmatpush1.bf16.msra.mxu0 %v1995
    %2038 = vmatprep.subr.bf16.mxu0 0
    %2039 = vmatpush1.bf16.msra.mxu0 %v1996
    %2040 = vmatprep.subr.bf16.mxu0 0
    %2041 = vmatpush1.bf16.msra.mxu0 %v1997
    %2042 = vmatprep.subr.bf16.mxu0 0
    %2043 = vmatpush1.bf16.msra.mxu0 %v1998
    %2044 = vmatprep.subr.bf16.mxu0 0
    %2045 = vmatpush1.bf16.msra.mxu0 %v1999
    %2046 = vmatprep.subr.bf16.mxu0 0
    %2047 = vmatpush1.bf16.msra.mxu0 %v2000
    %2048 = vmatprep.subr.bf16.mxu0 0
    %2049 = vmatpush1.bf16.msra.mxu0 %v2001
    %2050 = vmatprep.mubr.bf16.mxu0 %v1921
    %2051 = vmatmul.mubr.bf16.gmra.mrb[0].mxu0 %v1920
    %v2052 = vpop.f32.mrb[0].mxu0
    %v2053 = vadd.f32 %v1919, %v2052
    %v2054 = vpop.f32.mrb[0].mxu0
    %v2055 = vpop.f32.mrb[0].mxu0
    %v2056 = vpop.f32.mrb[0].mxu0
    %2057 = vdwg.mxu0
    %v2058 = vmul.f32 %v2053, 0.01
    %v2059 = vmax.f32 %v2053, %v2058
    %v2060 = vld [vmem:[#allocation4 + $0xe00] sm:$0xf]
    %v2061 = vld [vmem:[#allocation4 + $0xe10] sm:$0xf]
    %v2062 = vld [vmem:[#allocation4 + $0xe20] sm:$0xf]
    %v2063 = vld [vmem:[#allocation4 + $0xe30] sm:$0xf]
    %v2064 = vld [vmem:[#allocation4 + $0xe40] sm:$0xf]
    %v2065 = vld [vmem:[#allocation4 + $0xe50] sm:$0xf]
    %v2066 = vld [vmem:[#allocation4 + $0xe60] sm:$0xf]
    %v2067 = vld [vmem:[#allocation4 + $0xe70] sm:$0xf]
    %v2068 = vld [vmem:[#allocation4 + $0xe80] sm:$0xf]
    %v2069 = vld [vmem:[#allocation4 + $0xe90] sm:$0xf]
    %v2070 = vld [vmem:[#allocation4 + $0xea0] sm:$0xf]
    %v2071 = vld [vmem:[#allocation4 + $0xeb0] sm:$0xf]
    %v2072 = vld [vmem:[#allocation4 + $0xec0] sm:$0xf]
    %v2073 = vld [vmem:[#allocation4 + $0xed0] sm:$0xf]
    %v2074 = vld [vmem:[#allocation4 + $0xee0] sm:$0xf]
    %v2075 = vld [vmem:[#allocation4 + $0xef0] sm:$0xf]
    %v2076 = vld [vmem:[#allocation6 + $0x21] ss:$0 sm:$0xff]
    %v2077 = vpack.c.bf16 %v2059, %v2059
    %v2094 = vunpack.c.l.b16 %v2060
    %v2095 = vunpack.c.l.b16 %v2061
    %v2096 = vunpack.c.l.b16 %v2062
    %v2097 = vunpack.c.l.b16 %v2063
    %v2098 = vunpack.c.l.b16 %v2064
    %v2099 = vunpack.c.l.b16 %v2065
    %v2100 = vunpack.c.l.b16 %v2066
    %v2101 = vunpack.c.l.b16 %v2067
    %v2102 = vunpack.c.l.b16 %v2068
    %v2103 = vunpack.c.l.b16 %v2069
    %v2104 = vunpack.c.l.b16 %v2070
    %v2105 = vunpack.c.l.b16 %v2071
    %v2106 = vunpack.c.l.b16 %v2072
    %v2107 = vunpack.c.l.b16 %v2073
    %v2108 = vunpack.c.l.b16 %v2074
    %v2109 = vunpack.c.l.b16 %v2075
    %v2110 = vpack.c.b16 %v2095, %v2094
    %v2111 = vpack.c.b16 %v2097, %v2096
    %v2112 = vpack.c.b16 %v2099, %v2098
    %v2113 = vpack.c.b16 %v2101, %v2100
    %v2114 = vpack.c.b16 %v2103, %v2102
    %v2115 = vpack.c.b16 %v2105, %v2104
    %v2116 = vpack.c.b16 %v2107, %v2106
    %v2117 = vpack.c.b16 %v2109, %v2108
    %2126 = vmatprep.subr.bf16.mxu0 0
    %2127 = vmatpush1.bf16.msra.mxu0 %v2110
    %2128 = vmatprep.subr.bf16.mxu0 0
    %2129 = vmatpush1.bf16.msra.mxu0 %v2111
    %2130 = vmatprep.subr.bf16.mxu0 0
    %2131 = vmatpush1.bf16.msra.mxu0 %v2112
    %2132 = vmatprep.subr.bf16.mxu0 0
    %2133 = vmatpush1.bf16.msra.mxu0 %v2113
    %2134 = vmatprep.subr.bf16.mxu0 0
    %2135 = vmatpush1.bf16.msra.mxu0 %v2114
    %2136 = vmatprep.subr.bf16.mxu0 0
    %2137 = vmatpush1.bf16.msra.mxu0 %v2115
    %2138 = vmatprep.subr.bf16.mxu0 0
    %2139 = vmatpush1.bf16.msra.mxu0 %v2116
    %2140 = vmatprep.subr.bf16.mxu0 0
    %2141 = vmatpush1.bf16.msra.mxu0 %v2117
    %2142 = vmatprep.subr.bf16.mxu0 0
    %2143 = vmatpush1.bf16.msra.mxu0 0
    %2144 = vmatprep.subr.bf16.mxu0 0
    %2145 = vmatpush1.bf16.msra.mxu0 0
    %2146 = vmatprep.subr.bf16.mxu0 0
    %2147 = vmatpush1.bf16.msra.mxu0 0
    %2148 = vmatprep.subr.bf16.mxu0 0
    %2149 = vmatpush1.bf16.msra.mxu0 0
    %2150 = vmatprep.subr.bf16.mxu0 0
    %2151 = vmatpush1.bf16.msra.mxu0 0
    %2152 = vmatprep.subr.bf16.mxu0 0
    %2153 = vmatpush1.bf16.msra.mxu0 0
    %2154 = vmatprep.subr.bf16.mxu0 0
    %2155 = vmatpush1.bf16.msra.mxu0 0
    %2156 = vmatprep.subr.bf16.mxu0 0
    %2157 = vmatpush1.bf16.msra.mxu0 0
    %2158 = vmatprep.mubr.bf16.mxu0 0
    %2159 = vmatmul.mubr.bf16.gmra.mrb[0].mxu0 %v2077
    %v2160 = vpop.f32.mrb[0].mxu0
    %v2161 = vadd.f32 %v2076, %v2160
    %v2162 = vpop.f32.mrb[0].mxu0
    %v2163 = vpop.f32.mrb[0].mxu0
    %v2164 = vpop.f32.mrb[0].mxu0
    %2165 = vdwg.mxu0
    %v2166 = vmul.f32 %v2161, 0.01
    %v2167 = vmax.f32 %v2161, %v2166
    %v2168 = vld [vmem:[#allocation4 + $0xf00] sm:$0xf]
    %v2169 = vld [vmem:[#allocation4 + $0xf10] sm:$0xf]
    %v2170 = vld [vmem:[#allocation4 + $0xf20] sm:$0xf]
    %v2171 = vld [vmem:[#allocation4 + $0xf30] sm:$0xf]
    %v2172 = vld [vmem:[#allocation4 + $0xf40] sm:$0xf]
    %v2173 = vld [vmem:[#allocation4 + $0xf50] sm:$0xf]
    %v2174 = vld [vmem:[#allocation4 + $0xf60] sm:$0xf]
    %v2175 = vld [vmem:[#allocation4 + $0xf70] sm:$0xf]
    %v2176 = vld [vmem:[#allocation6 + $0x22] ss:$0 sm:$0xff]
    %v2177 = vpack.c.bf16 %v2167, %v2167
    %v2186 = vunpack.c.l.b16 %v2168
    %v2187 = vunpack.c.l.b16 %v2169
    %v2188 = vunpack.c.l.b16 %v2170
    %v2189 = vunpack.c.l.b16 %v2171
    %v2190 = vunpack.c.l.b16 %v2172
    %v2191 = vunpack.c.l.b16 %v2173
    %v2192 = vunpack.c.l.b16 %v2174
    %v2193 = vunpack.c.l.b16 %v2175
    %v2194 = vpack.c.b16 %v2187, %v2186
    %v2195 = vpack.c.b16 %v2189, %v2188
    %v2196 = vpack.c.b16 %v2191, %v2190
    %v2197 = vpack.c.b16 %v2193, %v2192
    %v2203 = vsel %vm214, %v2177, 0
    %2205 = vmatprep.subr.bf16.mxu0 0
    %2206 = vmatpush1.bf16.msra.mxu0 %v2194
    %2207 = vmatprep.subr.bf16.mxu0 0
    %2208 = vmatpush1.bf16.msra.mxu0 %v2195
    %2209 = vmatprep.subr.bf16.mxu0 0
    %2210 = vmatpush1.bf16.msra.mxu0 %v2196
    %2211 = vmatprep.subr.bf16.mxu0 0
    %2212 = vmatpush1.bf16.msra.mxu0 %v2197
    %2213 = vmatprep.subr.bf16.mxu0 0
    %2214 = vmatpush1.bf16.msra.mxu0 0
    %2215 = vmatprep.subr.bf16.mxu0 0
    %2216 = vmatpush1.bf16.msra.mxu0 0
    %2217 = vmatprep.subr.bf16.mxu0 0
    %2218 = vmatpush1.bf16.msra.mxu0 0
    %2219 = vmatprep.subr.bf16.mxu0 0
    %2220 = vmatpush1.bf16.msra.mxu0 0
    %2221 = vmatprep.subr.bf16.mxu0 0
    %2222 = vmatpush1.bf16.msra.mxu0 0
    %2223 = vmatprep.subr.bf16.mxu0 0
    %2224 = vmatpush1.bf16.msra.mxu0 0
    %2225 = vmatprep.subr.bf16.mxu0 0
    %2226 = vmatpush1.bf16.msra.mxu0 0
    %2227 = vmatprep.subr.bf16.mxu0 0
    %2228 = vmatpush1.bf16.msra.mxu0 0
    %2229 = vmatprep.subr.bf16.mxu0 0
    %2230 = vmatpush1.bf16.msra.mxu0 0
    %2231 = vmatprep.subr.bf16.mxu0 0
    %2232 = vmatpush1.bf16.msra.mxu0 0
    %2233 = vmatprep.subr.bf16.mxu0 0
    %2234 = vmatpush1.bf16.msra.mxu0 0
    %2235 = vmatprep.subr.bf16.mxu0 0
    %2236 = vmatpush1.bf16.msra.mxu0 0
    %2237 = vmatprep.mubr.bf16.mxu0 0
    %2238 = vmatmul.mubr.bf16.gmra.mrb[0].mxu0 %v2203
    %v2239 = vpop.f32.mrb[0].mxu0
    %v2240 = vadd.f32 %v2176, %v2239
    %v2241 = vpop.f32.mrb[0].mxu0
    %v2242 = vpop.f32.mrb[0].mxu0
    %v2243 = vpop.f32.mrb[0].mxu0
    %2244 = vdwg.mxu0
    %v2245 = vmul.f32 %v2240, 0.01
    %v2246 = vmax.f32 %v2240, %v2245
    %v2247 = vld [vmem:[#allocation4 + $0xf80] sm:$0xf]
    %v2248 = vld [vmem:[#allocation4 + $0xf90] sm:$0xf]
    %v2249 = vld [vmem:[#allocation4 + $0xfa0] sm:$0xf]
    %v2250 = vld [vmem:[#allocation4 + $0xfb0] sm:$0xf]
    %v2251 = vld [vmem:[#allocation6 + $0x23] ss:$0 sm:$0xff]
    %v2252 = vpack.c.bf16 %v2246, %v2246
    %v2257 = vunpack.c.l.b16 %v2247
    %v2258 = vunpack.c.l.b16 %v2248
    %v2259 = vunpack.c.l.b16 %v2249
    %v2260 = vunpack.c.l.b16 %v2250
    %v2261 = vpack.c.b16 %v2258, %v2257
    %v2262 = vpack.c.b16 %v2260, %v2259
    %v2266 = vsel %vm134, %v2252, 0
    %2268 = vmatprep.subr.bf16.mxu0 0
    %2269 = vmatpush1.bf16.msra.mxu0 %v2261
    %2270 = vmatprep.subr.bf16.mxu0 0
    %2271 = vmatpush1.bf16.msra.mxu0 %v2262
    %2272 = vmatprep.subr.bf16.mxu0 0
    %2273 = vmatpush1.bf16.msra.mxu0 0
    %2274 = vmatprep.subr.bf16.mxu0 0
    %2275 = vmatpush1.bf16.msra.mxu0 0
    %2276 = vmatprep.subr.bf16.mxu0 0
    %2277 = vmatpush1.bf16.msra.mxu0 0
    %2278 = vmatprep.subr.bf16.mxu0 0
    %2279 = vmatpush1.bf16.msra.mxu0 0
    %2280 = vmatprep.subr.bf16.mxu0 0
    %2281 = vmatpush1.bf16.msra.mxu0 0
    %2282 = vmatprep.subr.bf16.mxu0 0
    %2283 = vmatpush1.bf16.msra.mxu0 0
    %2284 = vmatprep.subr.bf16.mxu0 0
    %2285 = vmatpush1.bf16.msra.mxu0 0
    %2286 = vmatprep.subr.bf16.mxu0 0
    %2287 = vmatpush1.bf16.msra.mxu0 0
    %2288 = vmatprep.subr.bf16.mxu0 0
    %2289 = vmatpush1.bf16.msra.mxu0 0
    %2290 = vmatprep.subr.bf16.mxu0 0
    %2291 = vmatpush1.bf16.msra.mxu0 0
    %2292 = vmatprep.subr.bf16.mxu0 0
    %2293 = vmatpush1.bf16.msra.mxu0 0
    %2294 = vmatprep.subr.bf16.mxu0 0
    %2295 = vmatpush1.bf16.msra.mxu0 0
    %2296 = vmatprep.subr.bf16.mxu0 0
    %2297 = vmatpush1.bf16.msra.mxu0 0
    %2298 = vmatprep.subr.bf16.mxu0 0
    %2299 = vmatpush1.bf16.msra.mxu0 0
    %2300 = vmatprep.mubr.bf16.mxu0 0
    %2301 = vmatmul.mubr.bf16.gmra.mrb[0].mxu0 %v2266
    %v2302 = vpop.f32.mrb[0].mxu0
    %v2303 = vadd.f32 %v2251, %v2302
    %v2304 = vpop.f32.mrb[0].mxu0
    %v2305 = vpop.f32.mrb[0].mxu0
    %v2306 = vpop.f32.mrb[0].mxu0
    %2307 = vdwg.mxu0
    %2309 = vrot.lane.b32.xlu0 %v1250, 4
    %v2310 = vpop.permute.xlu0 %2309
    %v2312 = vsel %vm61, %v2303, %v2310
    %vm2313 = vcmask 97280
    %v2314 = vsel %vm2313, %v2312, %v2310
    %vm2315 = vcmask 162816
    %v2316 = vsel %vm2315, %v2314, 0.0
    %2317 = vst [vmem:[%s4] sm:$0xff] %v2316
    // Predicated region
    $region30: #{vae_forward.1} parent=1 // pred_check
      _
    $region31: #{vae_forward.1} parent=1 // pred_check_branch
      %2319 = sbr.rel (0) target = $region33
    $region32: #{vae_forward.1} parent=1 // pred_region
      _
    $region33: #{vae_forward.1} parent=1 // pred_fallthru
      _
    // Predicated region
    $region34: #{vae_forward.1} parent=1 // pred_check
      _
    $region35: #{vae_forward.1} parent=1 // pred_check_branch
      %2321 = sbr.rel (0) target = $region37
    $region36: #{vae_forward.1} parent=1 // pred_region
      _
    $region37: #{vae_forward.1} parent=1 // pred_fallthru
      _
    %2322 = vsyncpa [#allocation3], 1
    %2323 = vsyncpa [#allocation5], 1

</llo_original>
